<compile_context>
chip_gen: v6e
topology: v6e:2x2x1
jax: 0.10.0
libtpu: 0.0.40
codegen_flags: <defaults>
</compile_context>

<pallas_src>
import functools

import jax
import jax.numpy as jnp
from jax import lax
from jax.experimental import pallas as pl
from jax.experimental.pallas import tpu as pltpu

MANIPULATION_OPTIONS = ("gaussian_blur", "gaussian_noise", "darken")
DARKEN_FACTOR = 0.6
NOISE_SIGMA_U8 = 0.05 * 255.0  # noise std in the 0..255 (uint8) domain


def _i32(v):
    """Python int -> value representable as int32 (two's complement wrap)."""
    v &= 0xFFFFFFFF
    return v - (1 << 32) if v >= (1 << 31) else v


_M1 = _i32(0x85EBCA6B)
_M2 = _i32(0xC2B2AE35)
_GOLD = _i32(0x9E3779B9)


def _lsr(x, s):
    """Logical right shift on int32 (arithmetic shift + mask; jnp broadcasts)."""
    return jnp.bitwise_and(jnp.right_shift(x, s), jnp.int32((1 << (32 - s)) - 1))


def _mix32(x):
    """murmur3-style int32 finalizer: xor / shift / int multiply (VPU only)."""
    x = x ^ _lsr(x, 16)
    x = x * jnp.int32(_M1)
    x = x ^ _lsr(x, 13)
    x = x * jnp.int32(_M2)
    x = x ^ _lsr(x, 16)
    return x


def _std_normal(idx, seed):
    """Approx N(0,1) per element: Irwin-Hall sum of 12 16-bit uniforms drawn
    from 6 counter-based hash words (both halves of each word used)."""
    base = idx + seed * jnp.int32(_GOLD)
    acc = jnp.zeros(idx.shape, jnp.float32)
    for k in range(6):
        h = _mix32(base + jnp.int32(_i32((k + 1) * 0x9E3779B9)))
        lo = jnp.bitwise_and(h, jnp.int32(0xFFFF)).astype(jnp.float32)
        hi = _lsr(h, 16).astype(jnp.float32)
        acc = acc + lo + hi
    return acc * jnp.float32(1.0 / 65536.0) - 6.0


def _gaussian_blur_3x3(q, H, W):
    """Separable [0.25, 0.5, 0.25] blur with BORDER_REFLECT_101 edges
    (cv.GaussianBlur((3,3), 0) default) on a (C, Hp, Wp) block.  Lane rolls do
    the horizontal pass, sublane rolls the vertical pass; channels never mix
    (C is the leading, untouched dim)."""
    _, Hp, Wp = q.shape
    row = lax.broadcasted_iota(jnp.int32, q.shape, 1)
    col = lax.broadcasted_iota(jnp.int32, q.shape, 2)

    # horizontal pass: +-1 lane (positive shifts only)
    left = pltpu.roll(q, 1, axis=2)            # left[j]  = q[j-1]
    right = pltpu.roll(q, Wp - 1, axis=2)      # right[j] = q[j+1]
    l = jnp.where(col == 0, right, left)       # reflect101: x[-1] -> x[1]
    r = jnp.where(col == W - 1, left, right)   # reflect101: x[W]  -> x[W-2]
    hq = 0.25 * l + 0.5 * q + 0.25 * r

    # vertical pass: +-1 sublane
    up = pltpu.roll(hq, 1, axis=1)             # up[i] = hq[i-1]
    dn = pltpu.roll(hq, Hp - 1, axis=1)        # dn[i] = hq[i+1]
    u = jnp.where(row == 0, dn, up)            # reflect101: row -1 -> row 1
    d = jnp.where(row == H - 1, up, dn)        # reflect101: row H  -> row H-2
    return 0.25 * u + 0.5 * hq + 0.25 * d


def _degradation_kernel(opt_ref, seed_ref, x_ref, o_ref, *, H, W):
    # opt_ref / seed_ref: (B,) int32 scalar-prefetch (SMEM)
    # x_ref / o_ref: (1, C, Hp, Wp) VMEM blocks (zero padded past H, W)
    b = pl.program_id(0)
    opt = opt_ref[b]
    seed = seed_ref[b]

    x = x_ref[0]                             # (C, Hp, Wp) float32 in [0, 1]
    q = jnp.floor(x * 255.0)                 # emulate (x*255).astype(np.uint8)

    def finish(deg_u8):
        # emulate uint8 output of image_manipulation, then .float() / 255.0
        # (round-half-up ~= OpenCV saturate_cast for non-negative values)
        deg_u8 = jnp.clip(jnp.floor(deg_u8 + 0.5), 0.0, 255.0)
        o_ref[0] = (deg_u8 * (1.0 / 255.0)).astype(o_ref.dtype)

    @pl.when(opt == 0)                       # "gaussian_blur"
    def _():
        finish(_gaussian_blur_3x3(q, H, W))

    @pl.when(opt == 1)                       # "gaussian_noise"
    def _():
        C, Hp, Wp = q.shape
        ic = lax.broadcasted_iota(jnp.int32, q.shape, 0)
        ih = lax.broadcasted_iota(jnp.int32, q.shape, 1)
        iw = lax.broadcasted_iota(jnp.int32, q.shape, 2)
        idx = (ic * Hp + ih) * Wp + iw
        finish(q + NOISE_SIGMA_U8 * _std_normal(idx, seed))

    @pl.when(jnp.logical_and(opt != 0, opt != 1))   # "darken" (catch-all)
    def _():
        finish(q * DARKEN_FACTOR)


def degradation_layers(x: jax.Array, opt_ids: jax.Array, seeds: jax.Array) -> jax.Array:
    """x: (B, C, H, W) float32 in [0,1]; opt_ids: (B,) int32; seeds: (B,) int32."""
    B, C, H, W = x.shape
    Hp = -(-H // 8) * 8          # dense sublanes
    Wp = -(-W // 128) * 128      # lane-dense, unmasked stores
    if (Hp, Wp) != (H, W):
        x_p = jnp.pad(x, ((0, 0), (0, 0), (0, Hp - H), (0, Wp - W)))
    else:
        x_p = x

    block_bytes = C * Hp * Wp * 4
    vmem_limit = int(min(max(6 * block_bytes, 32 * 1024 * 1024), 100 * 1024 * 1024))

    kernel = functools.partial(_degradation_kernel, H=H, W=W)
    out_p = pl.pallas_call(
        kernel,
        out_shape=jax.ShapeDtypeStruct((B, C, Hp, Wp), x.dtype),
        grid_spec=pltpu.PrefetchScalarGridSpec(
            num_scalar_prefetch=2,
            grid=(B,),
            in_specs=[pl.BlockSpec((1, C, Hp, Wp),
                                   lambda b, opt, seed: (b, 0, 0, 0))],
            out_specs=pl.BlockSpec((1, C, Hp, Wp),
                                   lambda b, opt, seed: (b, 0, 0, 0)),
        ),
        compiler_params=pltpu.CompilerParams(
            dimension_semantics=("parallel",),
            vmem_limit_bytes=vmem_limit),
        cost_estimate=pl.CostEstimate(
            flops=80 * B * C * Hp * Wp,
            transcendentals=0,
            bytes_accessed=2 * B * C * Hp * Wp * 4),
    )(opt_ids.astype(jnp.int32), seeds.astype(jnp.int32), x_p)
    return out_p[..., :H, :W]


def _blur_ref(q, ):
    """Pure-JAX reference of the in-kernel blur (reflect-101, float domain)."""
    qp = jnp.pad(q, ((0, 0), (0, 0), (1, 1)), mode="reflect")
    hq = 0.25 * qp[:, :, :-2] + 0.5 * qp[:, :, 1:-1] + 0.25 * qp[:, :, 2:]
    hp = jnp.pad(hq, ((0, 0), (1, 1), (0, 0)), mode="reflect")
    vq = 0.25 * hp[:, :-2, :] + 0.5 * hp[:, 1:-1, :] + 0.25 * hp[:, 2:, :]
    return jnp.clip(jnp.floor(vq + 0.5), 0.0, 255.0) * (1.0 / 255.0)


if __name__ == "__main__":
    # TODO(synk): `image_manipulation` is undefined in the source module; the
    # three degradations above are deterministic stand-ins, and the per-image
    # python `random.choice` is replaced by explicit opt_ids / per-image seeds.
    B, C, H, W = 4, 3, 16, 16
    key = jax.random.PRNGKey(0)
    kx, kseed = jax.random.split(key)

    x = jax.random.uniform(kx, (B, C, H, W), dtype=jnp.float32)      # [0, 1)
    opt_ids = jnp.array([0, 1, 2, 1], dtype=jnp.int32)               # blur, noise, darken, noise
    seeds = jax.random.randint(kseed, (B,), 0, 2**30, dtype=jnp.int32)

    out = jax.block_until_ready(degradation_layers(x, opt_ids, seeds))

    assert out.shape == (B, C, H, W) and out.dtype == jnp.float32
    assert bool(jnp.all(out >= 0.0)) and bool(jnp.all(out <= 1.0))

    q = jnp.floor(x * 255.0)
    # "darken" image is fully deterministic -> verify exactly
    ref2 = jnp.clip(jnp.floor(q[2] * DARKEN_FACTOR + 0.5), 0.0, 255.0) * (1.0 / 255.0)
    assert bool(jnp.allclose(out[2], ref2, atol=1e-6))
    # "gaussian_blur" image -> verify against a pure-JAX reference (1 LSB slack)
    ref0 = _blur_ref(q[0])
    assert bool(jnp.max(jnp.abs(out[0] - ref0)) <= (1.0 / 255.0) + 1e-6)
    # "gaussian_noise" images -> quantised to the u8 grid and actually perturbed
    assert bool(jnp.any(jnp.abs(out[1] - q[1] / 255.0) > 1e-6))
    assert bool(jnp.any(jnp.abs(out[3] - q[3] / 255.0) > 1e-6))

    print("KERNEL_OK")
</pallas_src>

<mosaic_0001>
module attributes {stable_mosaic.version = 11 : i64} {
  func.func @_degradation_kernel(%arg0: i32, %arg1: memref<4xi32, #tpu.memory_space<smem>>, %arg2: memref<4xi32, #tpu.memory_space<smem>>, %arg3: memref<1x3x16x128xf32, #tpu.memory_space<vmem>>, %arg4: memref<1x3x16x128xf32, #tpu.memory_space<vmem>>) attributes {dimension_semantics = [#tpu.dimension_semantics<parallel>], iteration_bounds = array<i64: 4>, scalar_prefetch = 2 : i64, scratch_operands = 0 : i64, tpu.core_type = #tpu.core_type<tc>, window_params = [{transform_indices = @transform_0, window_bounds = array<i64: 1, 3, 16, 128>}, {transform_indices = @transform_1, window_bounds = array<i64: 1, 3, 16, 128>}]} {
    %0 = arith.index_cast %arg0 : i32 to index
    %1 = memref.load %arg1[%0] : memref<4xi32, #tpu.memory_space<smem>>
    %2 = arith.index_cast %arg0 : i32 to index
    %3 = memref.load %arg2[%2] : memref<4xi32, #tpu.memory_space<smem>>
    %c0 = arith.constant 0 : index
    %c0_0 = arith.constant 0 : index
    %c0_1 = arith.constant 0 : index
    %c0_2 = arith.constant 0 : index
    %4 = vector.load %arg3[%c0, %c0_0, %c0_1, %c0_2] : memref<1x3x16x128xf32, #tpu.memory_space<vmem>>, vector<1x3x16x128xf32>
    %5 = vector.shape_cast %4 : vector<1x3x16x128xf32> to vector<3x16x128xf32>
    %cst = arith.constant 2.550000e+02 : f32
    %6 = vector.broadcast %cst : f32 to vector<3x16x128xf32>
    %7 = arith.mulf %5, %6 : vector<3x16x128xf32>
    %8 = math.floor %7 : vector<3x16x128xf32>
    %c0_i32 = arith.constant 0 : i32
    %9 = arith.cmpi eq, %1, %c0_i32 : i32
    %10 = arith.extui %9 : i1 to i32
    %c0_i32_3 = arith.constant 0 : i32
    %11 = arith.cmpi ne, %10, %c0_i32_3 : i32
    scf.if %11 {
      %20 = tpu.iota {dimensions = array<i32: 1>} : vector<3x16x128xi32>
      %21 = tpu.iota {dimensions = array<i32: 2>} : vector<3x16x128xi32>
      %c1_i32_8 = arith.constant 1 : i32
      %22 = tpu.dynamic_rotate %8 by %c1_i32_8 dim 2 : vector<3x16x128xf32>, i32 -> vector<3x16x128xf32>
      %c127_i32 = arith.constant 127 : i32
      %23 = tpu.dynamic_rotate %8 by %c127_i32 dim 2 : vector<3x16x128xf32>, i32 -> vector<3x16x128xf32>
      %c0_i32_9 = arith.constant 0 : i32
      %24 = vector.broadcast %c0_i32_9 : i32 to vector<3x16x128xi32>
      %25 = arith.cmpi eq, %21, %24 : vector<3x16x128xi32>
      %26 = arith.select %25, %23, %22 : vector<3x16x128xi1>, vector<3x16x128xf32>
      %c15_i32 = arith.constant 15 : i32
      %27 = vector.broadcast %c15_i32 : i32 to vector<3x16x128xi32>
      %28 = arith.cmpi eq, %21, %27 : vector<3x16x128xi32>
      %29 = arith.select %28, %22, %23 : vector<3x16x128xi1>, vector<3x16x128xf32>
      %cst_10 = arith.constant 2.500000e-01 : f32
      %30 = vector.broadcast %cst_10 : f32 to vector<3x16x128xf32>
      %31 = arith.mulf %30, %26 : vector<3x16x128xf32>
      %cst_11 = arith.constant 5.000000e-01 : f32
      %32 = vector.broadcast %cst_11 : f32 to vector<3x16x128xf32>
      %33 = arith.mulf %32, %8 : vector<3x16x128xf32>
      %34 = arith.addf %31, %33 : vector<3x16x128xf32>
      %cst_12 = arith.constant 2.500000e-01 : f32
      %35 = vector.broadcast %cst_12 : f32 to vector<3x16x128xf32>
      %36 = arith.mulf %35, %29 : vector<3x16x128xf32>
      %37 = arith.addf %34, %36 : vector<3x16x128xf32>
      %c1_i32_13 = arith.constant 1 : i32
      %38 = tpu.dynamic_rotate %37 by %c1_i32_13 dim 1 : vector<3x16x128xf32>, i32 -> vector<3x16x128xf32>
      %c15_i32_14 = arith.constant 15 : i32
      %39 = tpu.dynamic_rotate %37 by %c15_i32_14 dim 1 : vector<3x16x128xf32>, i32 -> vector<3x16x128xf32>
      %c0_i32_15 = arith.constant 0 : i32
      %40 = vector.broadcast %c0_i32_15 : i32 to vector<3x16x128xi32>
      %41 = arith.cmpi eq, %20, %40 : vector<3x16x128xi32>
      %42 = arith.select %41, %39, %38 : vector<3x16x128xi1>, vector<3x16x128xf32>
      %c15_i32_16 = arith.constant 15 : i32
      %43 = vector.broadcast %c15_i32_16 : i32 to vector<3x16x128xi32>
      %44 = arith.cmpi eq, %20, %43 : vector<3x16x128xi32>
      %45 = arith.select %44, %38, %39 : vector<3x16x128xi1>, vector<3x16x128xf32>
      %cst_17 = arith.constant 2.500000e-01 : f32
      %46 = vector.broadcast %cst_17 : f32 to vector<3x16x128xf32>
      %47 = arith.mulf %46, %42 : vector<3x16x128xf32>
      %cst_18 = arith.constant 5.000000e-01 : f32
      %48 = vector.broadcast %cst_18 : f32 to vector<3x16x128xf32>
      %49 = arith.mulf %48, %37 : vector<3x16x128xf32>
      %50 = arith.addf %47, %49 : vector<3x16x128xf32>
      %cst_19 = arith.constant 2.500000e-01 : f32
      %51 = vector.broadcast %cst_19 : f32 to vector<3x16x128xf32>
      %52 = arith.mulf %51, %45 : vector<3x16x128xf32>
      %53 = arith.addf %50, %52 : vector<3x16x128xf32>
      %cst_20 = arith.constant 5.000000e-01 : f32
      %54 = vector.broadcast %cst_20 : f32 to vector<3x16x128xf32>
      %55 = arith.addf %53, %54 : vector<3x16x128xf32>
      %56 = math.floor %55 : vector<3x16x128xf32>
      %cst_21 = arith.constant 0.000000e+00 : f32
      %cst_22 = arith.constant 2.550000e+02 : f32
      %57 = vector.broadcast %cst_21 : f32 to vector<3x16x128xf32>
      %58 = arith.maximumf %57, %56 : vector<3x16x128xf32>
      %59 = vector.broadcast %cst_22 : f32 to vector<3x16x128xf32>
      %60 = arith.minimumf %59, %58 : vector<3x16x128xf32>
      %cst_23 = arith.constant 0.00392156886 : f32
      %61 = vector.broadcast %cst_23 : f32 to vector<3x16x128xf32>
      %62 = arith.mulf %60, %61 : vector<3x16x128xf32>
      %c0_24 = arith.constant 0 : index
      %c0_25 = arith.constant 0 : index
      %c0_26 = arith.constant 0 : index
      %c0_27 = arith.constant 0 : index
      %63 = vector.load %arg4[%c0_24, %c0_25, %c0_26, %c0_27] : memref<1x3x16x128xf32, #tpu.memory_space<vmem>>, vector<1x3x16x128xf32>
      %64 = vector.shape_cast %63 : vector<1x3x16x128xf32> to vector<3x16x128xf32>
      %65 = vector.shape_cast %62 : vector<3x16x128xf32> to vector<1x3x16x128xf32>
      tpu.vector_store %arg4[%c0_24, %c0_25, %c0_26, %c0_27], %65 {strides = array<i32>} : memref<1x3x16x128xf32, #tpu.memory_space<vmem>>, vector<1x3x16x128xf32>,
    } else {
    }
    %c1_i32 = arith.constant 1 : i32
    %12 = arith.cmpi eq, %1, %c1_i32 : i32
    %13 = arith.extui %12 : i1 to i32
    %c0_i32_4 = arith.constant 0 : i32
    %14 = arith.cmpi ne, %13, %c0_i32_4 : i32
    scf.if %14 {
      %20 = tpu.iota {dimensions = array<i32: 0>} : vector<3x16x128xi32>
      %21 = tpu.iota {dimensions = array<i32: 1>} : vector<3x16x128xi32>
      %22 = tpu.iota {dimensions = array<i32: 2>} : vector<3x16x128xi32>
      %c16_i32 = arith.constant 16 : i32
      %23 = vector.broadcast %c16_i32 : i32 to vector<3x16x128xi32>
      %24 = arith.muli %20, %23 : vector<3x16x128xi32>
      %25 = arith.addi %24, %21 : vector<3x16x128xi32>
      %c128_i32 = arith.constant 128 : i32
      %26 = vector.broadcast %c128_i32 : i32 to vector<3x16x128xi32>
      %27 = arith.muli %25, %26 : vector<3x16x128xi32>
      %28 = arith.addi %27, %22 : vector<3x16x128xi32>
      %c-1640531527_i32 = arith.constant -1640531527 : i32
      %29 = arith.muli %3, %c-1640531527_i32 : i32
      %30 = vector.broadcast %29 : i32 to vector<3x16x128xi32>
      %31 = arith.addi %28, %30 : vector<3x16x128xi32>
      %cst_8 = arith.constant 0.000000e+00 : f32
      %32 = vector.broadcast %cst_8 : f32 to vector<3x16x128xf32>
      %c-1640531527_i32_9 = arith.constant -1640531527 : i32
      %33 = vector.broadcast %c-1640531527_i32_9 : i32 to vector<3x16x128xi32>
      %34 = arith.addi %31, %33 : vector<3x16x128xi32>
      %c16_i32_10 = arith.constant 16 : i32
      %35 = vector.broadcast %c16_i32_10 : i32 to vector<3x16x128xi32>
      %36 = arith.shrsi %34, %35 : vector<3x16x128xi32>
      %c65535_i32 = arith.constant 65535 : i32
      %37 = vector.broadcast %c65535_i32 : i32 to vector<3x16x128xi32>
      %38 = arith.andi %36, %37 : vector<3x16x128xi32>
      %39 = arith.xori %34, %38 : vector<3x16x128xi32>
      %c-2048144789_i32 = arith.constant -2048144789 : i32
      %40 = vector.broadcast %c-2048144789_i32 : i32 to vector<3x16x128xi32>
      %41 = arith.muli %39, %40 : vector<3x16x128xi32>
      %c13_i32 = arith.constant 13 : i32
      %42 = vector.broadcast %c13_i32 : i32 to vector<3x16x128xi32>
      %43 = arith.shrsi %41, %42 : vector<3x16x128xi32>
      %c524287_i32 = arith.constant 524287 : i32
      %44 = vector.broadcast %c524287_i32 : i32 to vector<3x16x128xi32>
      %45 = arith.andi %43, %44 : vector<3x16x128xi32>
      %46 = arith.xori %41, %45 : vector<3x16x128xi32>
      %c-1028477387_i32 = arith.constant -1028477387 : i32
      %47 = vector.broadcast %c-1028477387_i32 : i32 to vector<3x16x128xi32>
      %48 = arith.muli %46, %47 : vector<3x16x128xi32>
      %c16_i32_11 = arith.constant 16 : i32
      %49 = vector.broadcast %c16_i32_11 : i32 to vector<3x16x128xi32>
      %50 = arith.shrsi %48, %49 : vector<3x16x128xi32>
      %c65535_i32_12 = arith.constant 65535 : i32
      %51 = vector.broadcast %c65535_i32_12 : i32 to vector<3x16x128xi32>
      %52 = arith.andi %50, %51 : vector<3x16x128xi32>
      %53 = arith.xori %48, %52 : vector<3x16x128xi32>
      %c65535_i32_13 = arith.constant 65535 : i32
      %54 = vector.broadcast %c65535_i32_13 : i32 to vector<3x16x128xi32>
      %55 = arith.andi %53, %54 : vector<3x16x128xi32>
      %56 = arith.sitofp %55 : vector<3x16x128xi32> to vector<3x16x128xf32>
      %c16_i32_14 = arith.constant 16 : i32
      %57 = vector.broadcast %c16_i32_14 : i32 to vector<3x16x128xi32>
      %58 = arith.shrsi %53, %57 : vector<3x16x128xi32>
      %c65535_i32_15 = arith.constant 65535 : i32
      %59 = vector.broadcast %c65535_i32_15 : i32 to vector<3x16x128xi32>
      %60 = arith.andi %58, %59 : vector<3x16x128xi32>
      %61 = arith.sitofp %60 : vector<3x16x128xi32> to vector<3x16x128xf32>
      %62 = arith.addf %32, %56 : vector<3x16x128xf32>
      %63 = arith.addf %62, %61 : vector<3x16x128xf32>
      %c1013904242_i32 = arith.constant 1013904242 : i32
      %64 = vector.broadcast %c1013904242_i32 : i32 to vector<3x16x128xi32>
      %65 = arith.addi %31, %64 : vector<3x16x128xi32>
      %c16_i32_16 = arith.constant 16 : i32
      %66 = vector.broadcast %c16_i32_16 : i32 to vector<3x16x128xi32>
      %67 = arith.shrsi %65, %66 : vector<3x16x128xi32>
      %c65535_i32_17 = arith.constant 65535 : i32
      %68 = vector.broadcast %c65535_i32_17 : i32 to vector<3x16x128xi32>
      %69 = arith.andi %67, %68 : vector<3x16x128xi32>
      %70 = arith.xori %65, %69 : vector<3x16x128xi32>
      %c-2048144789_i32_18 = arith.constant -2048144789 : i32
      %71 = vector.broadcast %c-2048144789_i32_18 : i32 to vector<3x16x128xi32>
      %72 = arith.muli %70, %71 : vector<3x16x128xi32>
      %c13_i32_19 = arith.constant 13 : i32
      %73 = vector.broadcast %c13_i32_19 : i32 to vector<3x16x128xi32>
      %74 = arith.shrsi %72, %73 : vector<3x16x128xi32>
      %c524287_i32_20 = arith.constant 524287 : i32
      %75 = vector.broadcast %c524287_i32_20 : i32 to vector<3x16x128xi32>
      %76 = arith.andi %74, %75 : vector<3x16x128xi32>
      %77 = arith.xori %72, %76 : vector<3x16x128xi32>
      %c-1028477387_i32_21 = arith.constant -1028477387 : i32
      %78 = vector.broadcast %c-1028477387_i32_21 : i32 to vector<3x16x128xi32>
      %79 = arith.muli %77, %78 : vector<3x16x128xi32>
      %c16_i32_22 = arith.constant 16 : i32
      %80 = vector.broadcast %c16_i32_22 : i32 to vector<3x16x128xi32>
      %81 = arith.shrsi %79, %80 : vector<3x16x128xi32>
      %c65535_i32_23 = arith.constant 65535 : i32
      %82 = vector.broadcast %c65535_i32_23 : i32 to vector<3x16x128xi32>
      %83 = arith.andi %81, %82 : vector<3x16x128xi32>
      %84 = arith.xori %79, %83 : vector<3x16x128xi32>
      %c65535_i32_24 = arith.constant 65535 : i32
      %85 = vector.broadcast %c65535_i32_24 : i32 to vector<3x16x128xi32>
      %86 = arith.andi %84, %85 : vector<3x16x128xi32>
      %87 = arith.sitofp %86 : vector<3x16x128xi32> to vector<3x16x128xf32>
      %c16_i32_25 = arith.constant 16 : i32
      %88 = vector.broadcast %c16_i32_25 : i32 to vector<3x16x128xi32>
      %89 = arith.shrsi %84, %88 : vector<3x16x128xi32>
      %c65535_i32_26 = arith.constant 65535 : i32
      %90 = vector.broadcast %c65535_i32_26 : i32 to vector<3x16x128xi32>
      %91 = arith.andi %89, %90 : vector<3x16x128xi32>
      %92 = arith.sitofp %91 : vector<3x16x128xi32> to vector<3x16x128xf32>
      %93 = arith.addf %63, %87 : vector<3x16x128xf32>
      %94 = arith.addf %93, %92 : vector<3x16x128xf32>
      %c-626627285_i32 = arith.constant -626627285 : i32
      %95 = vector.broadcast %c-626627285_i32 : i32 to vector<3x16x128xi32>
      %96 = arith.addi %31, %95 : vector<3x16x128xi32>
      %c16_i32_27 = arith.constant 16 : i32
      %97 = vector.broadcast %c16_i32_27 : i32 to vector<3x16x128xi32>
      %98 = arith.shrsi %96, %97 : vector<3x16x128xi32>
      %c65535_i32_28 = arith.constant 65535 : i32
      %99 = vector.broadcast %c65535_i32_28 : i32 to vector<3x16x128xi32>
      %100 = arith.andi %98, %99 : vector<3x16x128xi32>
      %101 = arith.xori %96, %100 : vector<3x16x128xi32>
      %c-2048144789_i32_29 = arith.constant -2048144789 : i32
      %102 = vector.broadcast %c-2048144789_i32_29 : i32 to vector<3x16x128xi32>
      %103 = arith.muli %101, %102 : vector<3x16x128xi32>
      %c13_i32_30 = arith.constant 13 : i32
      %104 = vector.broadcast %c13_i32_30 : i32 to vector<3x16x128xi32>
      %105 = arith.shrsi %103, %104 : vector<3x16x128xi32>
      %c524287_i32_31 = arith.constant 524287 : i32
      %106 = vector.broadcast %c524287_i32_31 : i32 to vector<3x16x128xi32>
      %107 = arith.andi %105, %106 : vector<3x16x128xi32>
      %108 = arith.xori %103, %107 : vector<3x16x128xi32>
      %c-1028477387_i32_32 = arith.constant -1028477387 : i32
      %109 = vector.broadcast %c-1028477387_i32_32 : i32 to vector<3x16x128xi32>
      %110 = arith.muli %108, %109 : vector<3x16x128xi32>
      %c16_i32_33 = arith.constant 16 : i32
      %111 = vector.broadcast %c16_i32_33 : i32 to vector<3x16x128xi32>
      %112 = arith.shrsi %110, %111 : vector<3x16x128xi32>
      %c65535_i32_34 = arith.constant 65535 : i32
      %113 = vector.broadcast %c65535_i32_34 : i32 to vector<3x16x128xi32>
      %114 = arith.andi %112, %113 : vector<3x16x128xi32>
      %115 = arith.xori %110, %114 : vector<3x16x128xi32>
      %c65535_i32_35 = arith.constant 65535 : i32
      %116 = vector.broadcast %c65535_i32_35 : i32 to vector<3x16x128xi32>
      %117 = arith.andi %115, %116 : vector<3x16x128xi32>
      %118 = arith.sitofp %117 : vector<3x16x128xi32> to vector<3x16x128xf32>
      %c16_i32_36 = arith.constant 16 : i32
      %119 = vector.broadcast %c16_i32_36 : i32 to vector<3x16x128xi32>
      %120 = arith.shrsi %115, %119 : vector<3x16x128xi32>
      %c65535_i32_37 = arith.constant 65535 : i32
      %121 = vector.broadcast %c65535_i32_37 : i32 to vector<3x16x128xi32>
      %122 = arith.andi %120, %121 : vector<3x16x128xi32>
      %123 = arith.sitofp %122 : vector<3x16x128xi32> to vector<3x16x128xf32>
      %124 = arith.addf %94, %118 : vector<3x16x128xf32>
      %125 = arith.addf %124, %123 : vector<3x16x128xf32>
      %c2027808484_i32 = arith.constant 2027808484 : i32
      %126 = vector.broadcast %c2027808484_i32 : i32 to vector<3x16x128xi32>
      %127 = arith.addi %31, %126 : vector<3x16x128xi32>
      %c16_i32_38 = arith.constant 16 : i32
      %128 = vector.broadcast %c16_i32_38 : i32 to vector<3x16x128xi32>
      %129 = arith.shrsi %127, %128 : vector<3x16x128xi32>
      %c65535_i32_39 = arith.constant 65535 : i32
      %130 = vector.broadcast %c65535_i32_39 : i32 to vector<3x16x128xi32>
      %131 = arith.andi %129, %130 : vector<3x16x128xi32>
      %132 = arith.xori %127, %131 : vector<3x16x128xi32>
      %c-2048144789_i32_40 = arith.constant -2048144789 : i32
      %133 = vector.broadcast %c-2048144789_i32_40 : i32 to vector<3x16x128xi32>
      %134 = arith.muli %132, %133 : vector<3x16x128xi32>
      %c13_i32_41 = arith.constant 13 : i32
      %135 = vector.broadcast %c13_i32_41 : i32 to vector<3x16x128xi32>
      %136 = arith.shrsi %134, %135 : vector<3x16x128xi32>
      %c524287_i32_42 = arith.constant 524287 : i32
      %137 = vector.broadcast %c524287_i32_42 : i32 to vector<3x16x128xi32>
      %138 = arith.andi %136, %137 : vector<3x16x128xi32>
      %139 = arith.xori %134, %138 : vector<3x16x128xi32>
      %c-1028477387_i32_43 = arith.constant -1028477387 : i32
      %140 = vector.broadcast %c-1028477387_i32_43 : i32 to vector<3x16x128xi32>
      %141 = arith.muli %139, %140 : vector<3x16x128xi32>
      %c16_i32_44 = arith.constant 16 : i32
      %142 = vector.broadcast %c16_i32_44 : i32 to vector<3x16x128xi32>
      %143 = arith.shrsi %141, %142 : vector<3x16x128xi32>
      %c65535_i32_45 = arith.constant 65535 : i32
      %144 = vector.broadcast %c65535_i32_45 : i32 to vector<3x16x128xi32>
      %145 = arith.andi %143, %144 : vector<3x16x128xi32>
      %146 = arith.xori %141, %145 : vector<3x16x128xi32>
      %c65535_i32_46 = arith.constant 65535 : i32
      %147 = vector.broadcast %c65535_i32_46 : i32 to vector<3x16x128xi32>
      %148 = arith.andi %146, %147 : vector<3x16x128xi32>
      %149 = arith.sitofp %148 : vector<3x16x128xi32> to vector<3x16x128xf32>
      %c16_i32_47 = arith.constant 16 : i32
      %150 = vector.broadcast %c16_i32_47 : i32 to vector<3x16x128xi32>
      %151 = arith.shrsi %146, %150 : vector<3x16x128xi32>
      %c65535_i32_48 = arith.constant 65535 : i32
      %152 = vector.broadcast %c65535_i32_48 : i32 to vector<3x16x128xi32>
      %153 = arith.andi %151, %152 : vector<3x16x128xi32>
      %154 = arith.sitofp %153 : vector<3x16x128xi32> to vector<3x16x128xf32>
      %155 = arith.addf %125, %149 : vector<3x16x128xf32>
      %156 = arith.addf %155, %154 : vector<3x16x128xf32>
      %c387276957_i32 = arith.constant 387276957 : i32
      %157 = vector.broadcast %c387276957_i32 : i32 to vector<3x16x128xi32>
      %158 = arith.addi %31, %157 : vector<3x16x128xi32>
      %c16_i32_49 = arith.constant 16 : i32
      %159 = vector.broadcast %c16_i32_49 : i32 to vector<3x16x128xi32>
      %160 = arith.shrsi %158, %159 : vector<3x16x128xi32>
      %c65535_i32_50 = arith.constant 65535 : i32
      %161 = vector.broadcast %c65535_i32_50 : i32 to vector<3x16x128xi32>
      %162 = arith.andi %160, %161 : vector<3x16x128xi32>
      %163 = arith.xori %158, %162 : vector<3x16x128xi32>
      %c-2048144789_i32_51 = arith.constant -2048144789 : i32
      %164 = vector.broadcast %c-2048144789_i32_51 : i32 to vector<3x16x128xi32>
      %165 = arith.muli %163, %164 : vector<3x16x128xi32>
      %c13_i32_52 = arith.constant 13 : i32
      %166 = vector.broadcast %c13_i32_52 : i32 to vector<3x16x128xi32>
      %167 = arith.shrsi %165, %166 : vector<3x16x128xi32>
      %c524287_i32_53 = arith.constant 524287 : i32
      %168 = vector.broadcast %c524287_i32_53 : i32 to vector<3x16x128xi32>
      %169 = arith.andi %167, %168 : vector<3x16x128xi32>
      %170 = arith.xori %165, %169 : vector<3x16x128xi32>
      %c-1028477387_i32_54 = arith.constant -1028477387 : i32
      %171 = vector.broadcast %c-1028477387_i32_54 : i32 to vector<3x16x128xi32>
      %172 = arith.muli %170, %171 : vector<3x16x128xi32>
      %c16_i32_55 = arith.constant 16 : i32
      %173 = vector.broadcast %c16_i32_55 : i32 to vector<3x16x128xi32>
      %174 = arith.shrsi %172, %173 : vector<3x16x128xi32>
      %c65535_i32_56 = arith.constant 65535 : i32
      %175 = vector.broadcast %c65535_i32_56 : i32 to vector<3x16x128xi32>
      %176 = arith.andi %174, %175 : vector<3x16x128xi32>
      %177 = arith.xori %172, %176 : vector<3x16x128xi32>
      %c65535_i32_57 = arith.constant 65535 : i32
      %178 = vector.broadcast %c65535_i32_57 : i32 to vector<3x16x128xi32>
      %179 = arith.andi %177, %178 : vector<3x16x128xi32>
      %180 = arith.sitofp %179 : vector<3x16x128xi32> to vector<3x16x128xf32>
      %c16_i32_58 = arith.constant 16 : i32
      %181 = vector.broadcast %c16_i32_58 : i32 to vector<3x16x128xi32>
      %182 = arith.shrsi %177, %181 : vector<3x16x128xi32>
      %c65535_i32_59 = arith.constant 65535 : i32
      %183 = vector.broadcast %c65535_i32_59 : i32 to vector<3x16x128xi32>
      %184 = arith.andi %182, %183 : vector<3x16x128xi32>
      %185 = arith.sitofp %184 : vector<3x16x128xi32> to vector<3x16x128xf32>
      %186 = arith.addf %156, %180 : vector<3x16x128xf32>
      %187 = arith.addf %186, %185 : vector<3x16x128xf32>
      %c-1253254570_i32 = arith.constant -1253254570 : i32
      %188 = vector.broadcast %c-1253254570_i32 : i32 to vector<3x16x128xi32>
      %189 = arith.addi %31, %188 : vector<3x16x128xi32>
      %c16_i32_60 = arith.constant 16 : i32
      %190 = vector.broadcast %c16_i32_60 : i32 to vector<3x16x128xi32>
      %191 = arith.shrsi %189, %190 : vector<3x16x128xi32>
      %c65535_i32_61 = arith.constant 65535 : i32
      %192 = vector.broadcast %c65535_i32_61 : i32 to vector<3x16x128xi32>
      %193 = arith.andi %191, %192 : vector<3x16x128xi32>
      %194 = arith.xori %189, %193 : vector<3x16x128xi32>
      %c-2048144789_i32_62 = arith.constant -2048144789 : i32
      %195 = vector.broadcast %c-2048144789_i32_62 : i32 to vector<3x16x128xi32>
      %196 = arith.muli %194, %195 : vector<3x16x128xi32>
      %c13_i32_63 = arith.constant 13 : i32
      %197 = vector.broadcast %c13_i32_63 : i32 to vector<3x16x128xi32>
      %198 = arith.shrsi %196, %197 : vector<3x16x128xi32>
      %c524287_i32_64 = arith.constant 524287 : i32
      %199 = vector.broadcast %c524287_i32_64 : i32 to vector<3x16x128xi32>
      %200 = arith.andi %198, %199 : vector<3x16x128xi32>
      %201 = arith.xori %196, %200 : vector<3x16x128xi32>
      %c-1028477387_i32_65 = arith.constant -1028477387 : i32
      %202 = vector.broadcast %c-1028477387_i32_65 : i32 to vector<3x16x128xi32>
      %203 = arith.muli %201, %202 : vector<3x16x128xi32>
      %c16_i32_66 = arith.constant 16 : i32
      %204 = vector.broadcast %c16_i32_66 : i32 to vector<3x16x128xi32>
      %205 = arith.shrsi %203, %204 : vector<3x16x128xi32>
      %c65535_i32_67 = arith.constant 65535 : i32
      %206 = vector.broadcast %c65535_i32_67 : i32 to vector<3x16x128xi32>
      %207 = arith.andi %205, %206 : vector<3x16x128xi32>
      %208 = arith.xori %203, %207 : vector<3x16x128xi32>
      %c65535_i32_68 = arith.constant 65535 : i32
      %209 = vector.broadcast %c65535_i32_68 : i32 to vector<3x16x128xi32>
      %210 = arith.andi %208, %209 : vector<3x16x128xi32>
      %211 = arith.sitofp %210 : vector<3x16x128xi32> to vector<3x16x128xf32>
      %c16_i32_69 = arith.constant 16 : i32
      %212 = vector.broadcast %c16_i32_69 : i32 to vector<3x16x128xi32>
      %213 = arith.shrsi %208, %212 : vector<3x16x128xi32>
      %c65535_i32_70 = arith.constant 65535 : i32
      %214 = vector.broadcast %c65535_i32_70 : i32 to vector<3x16x128xi32>
      %215 = arith.andi %213, %214 : vector<3x16x128xi32>
      %216 = arith.sitofp %215 : vector<3x16x128xi32> to vector<3x16x128xf32>
      %217 = arith.addf %187, %211 : vector<3x16x128xf32>
      %218 = arith.addf %217, %216 : vector<3x16x128xf32>
      %cst_71 = arith.constant 1.52587891E-5 : f32
      %219 = vector.broadcast %cst_71 : f32 to vector<3x16x128xf32>
      %220 = arith.mulf %218, %219 : vector<3x16x128xf32>
      %cst_72 = arith.constant 6.000000e+00 : f32
      %221 = vector.broadcast %cst_72 : f32 to vector<3x16x128xf32>
      %222 = arith.subf %220, %221 : vector<3x16x128xf32>
      %cst_73 = arith.constant 1.275000e+01 : f32
      %223 = vector.broadcast %cst_73 : f32 to vector<3x16x128xf32>
      %224 = arith.mulf %223, %222 : vector<3x16x128xf32>
      %225 = arith.addf %8, %224 : vector<3x16x128xf32>
      %cst_74 = arith.constant 5.000000e-01 : f32
      %226 = vector.broadcast %cst_74 : f32 to vector<3x16x128xf32>
      %227 = arith.addf %225, %226 : vector<3x16x128xf32>
      %228 = math.floor %227 : vector<3x16x128xf32>
      %cst_75 = arith.constant 0.000000e+00 : f32
      %cst_76 = arith.constant 2.550000e+02 : f32
      %229 = vector.broadcast %cst_75 : f32 to vector<3x16x128xf32>
      %230 = arith.maximumf %229, %228 : vector<3x16x128xf32>
      %231 = vector.broadcast %cst_76 : f32 to vector<3x16x128xf32>
      %232 = arith.minimumf %231, %230 : vector<3x16x128xf32>
      %cst_77 = arith.constant 0.00392156886 : f32
      %233 = vector.broadcast %cst_77 : f32 to vector<3x16x128xf32>
      %234 = arith.mulf %232, %233 : vector<3x16x128xf32>
      %c0_78 = arith.constant 0 : index
      %c0_79 = arith.constant 0 : index
      %c0_80 = arith.constant 0 : index
      %c0_81 = arith.constant 0 : index
      %235 = vector.load %arg4[%c0_78, %c0_79, %c0_80, %c0_81] : memref<1x3x16x128xf32, #tpu.memory_space<vmem>>, vector<1x3x16x128xf32>
      %236 = vector.shape_cast %235 : vector<1x3x16x128xf32> to vector<3x16x128xf32>
      %237 = vector.shape_cast %234 : vector<3x16x128xf32> to vector<1x3x16x128xf32>
      tpu.vector_store %arg4[%c0_78, %c0_79, %c0_80, %c0_81], %237 {strides = array<i32>} : memref<1x3x16x128xf32, #tpu.memory_space<vmem>>, vector<1x3x16x128xf32>,
    } else {
    }
    %c0_i32_5 = arith.constant 0 : i32
    %15 = arith.cmpi ne, %1, %c0_i32_5 : i32
    %c1_i32_6 = arith.constant 1 : i32
    %16 = arith.cmpi ne, %1, %c1_i32_6 : i32
    %17 = arith.andi %15, %16 : i1
    %18 = arith.extui %17 : i1 to i32
    %c0_i32_7 = arith.constant 0 : i32
    %19 = arith.cmpi ne, %18, %c0_i32_7 : i32
    scf.if %19 {
      %cst_8 = arith.constant 6.000000e-01 : f32
      %20 = vector.broadcast %cst_8 : f32 to vector<3x16x128xf32>
      %21 = arith.mulf %8, %20 : vector<3x16x128xf32>
      %cst_9 = arith.constant 5.000000e-01 : f32
      %22 = vector.broadcast %cst_9 : f32 to vector<3x16x128xf32>
      %23 = arith.addf %21, %22 : vector<3x16x128xf32>
      %24 = math.floor %23 : vector<3x16x128xf32>
      %cst_10 = arith.constant 0.000000e+00 : f32
      %cst_11 = arith.constant 2.550000e+02 : f32
      %25 = vector.broadcast %cst_10 : f32 to vector<3x16x128xf32>
      %26 = arith.maximumf %25, %24 : vector<3x16x128xf32>
      %27 = vector.broadcast %cst_11 : f32 to vector<3x16x128xf32>
      %28 = arith.minimumf %27, %26 : vector<3x16x128xf32>
      %cst_12 = arith.constant 0.00392156886 : f32
      %29 = vector.broadcast %cst_12 : f32 to vector<3x16x128xf32>
      %30 = arith.mulf %28, %29 : vector<3x16x128xf32>
      %c0_13 = arith.constant 0 : index
      %c0_14 = arith.constant 0 : index
      %c0_15 = arith.constant 0 : index
      %c0_16 = arith.constant 0 : index
      %31 = vector.load %arg4[%c0_13, %c0_14, %c0_15, %c0_16] : memref<1x3x16x128xf32, #tpu.memory_space<vmem>>, vector<1x3x16x128xf32>
      %32 = vector.shape_cast %31 : vector<1x3x16x128xf32> to vector<3x16x128xf32>
      %33 = vector.shape_cast %30 : vector<3x16x128xf32> to vector<1x3x16x128xf32>
      tpu.vector_store %arg4[%c0_13, %c0_14, %c0_15, %c0_16], %33 {strides = array<i32>} : memref<1x3x16x128xf32, #tpu.memory_space<vmem>>, vector<1x3x16x128xf32>,
    } else {
    }
    return
  }
  func.func @transform_0(%arg0: i32, %arg1: memref<4xi32, #tpu.memory_space<smem>>, %arg2: memref<4xi32, #tpu.memory_space<smem>>) -> (i32, i32, i32, i32) {
    %c0_i32 = arith.constant 0 : i32
    %c0_i32_0 = arith.constant 0 : i32
    %c0_i32_1 = arith.constant 0 : i32
    %c0_i32_2 = arith.constant 0 : i32
    return %arg0, %c0_i32, %c0_i32_0, %c0_i32_1 : i32, i32, i32, i32
  }
  func.func @transform_1(%arg0: i32, %arg1: memref<4xi32, #tpu.memory_space<smem>>, %arg2: memref<4xi32, #tpu.memory_space<smem>>) -> (i32, i32, i32, i32) {
    %c0_i32 = arith.constant 0 : i32
    %c0_i32_0 = arith.constant 0 : i32
    %c0_i32_1 = arith.constant 0 : i32
    %c0_i32_2 = arith.constant 0 : i32
    return %arg0, %c0_i32, %c0_i32_0, %c0_i32_1 : i32, i32, i32, i32
  }
}

</mosaic_0001>

<llo_original>
// kernel: tpu_custom_call.1
$region0: #{tpu_custom_call.1}
  #allocation0 [shape = 'u32[]', space=smem, size = 0x4, offset = 0x4, fixed_abs, tag = 'smem constant byte address 0x4 - core index']
  #allocation1 [shape = 'u32[144,128]{1,0:T(1,128)}', space=vmem, size = 0x12000, scoped, tag = 'internal scratch']
  #allocation2 [shape = 's32[1]{0}', space=sflag, size = 0x4, scoped, tag = 'scoped memory for tpu_custom_call.1']
  #allocation3 [shape = 'u8[512]{0}', space=smem, size = 0x200, scoped, tag = 'prefetched SMEM operand 0']
  #allocation4 [shape = 'u8[512]{0}', space=smem, size = 0x200, scoped, tag = 'prefetched SMEM operand 1']
  %s0 = inlined_call_operand.hbm [shape: s32[4], index: 0, kind: input, shape index: {}]
  %s1 = inlined_call_operand.vmem [shape: s32[4], index: 1, kind: input, shape index: {}]
  %s2 = inlined_call_operand.hbm [shape: f32[4,3,16,128], index: 2, kind: input, shape index: {}]
  %s3 = inlined_call_operand.hbm [shape: f32[4,3,16,128], index: 3, kind: output, shape index: {}]
  %s4 = sld [smem:[#allocation0]]
  $region53: #{tpu_custom_call.1} parent=0
    _
  %s6 = ssub.s32 1, %s4
  %s7 = scalar_select 0, %s6, %s4
  %9 = dma.hbm_to_smem %s0, 16, [#allocation3], [#allocation2]
  %s10 = sshll.u32 %s1, 4
  %s11 = int_to_ptr.vmem [resolvable:$true] %s10
  %13 = dma.vmem_to_smem %s11, 16, [#allocation4], [#allocation2]
  %14 = dma.done [#allocation2], 32
  %15 = sfence
  $region1: #{tpu_custom_call.1} parent=0
    #allocation5 [shape = 'u8[49152]{0}', space=vmem, size = 0xc000, scoped, tag = 'input window, operand 2']
    #allocation6 [shape = 's32[2]{0}', space=sflag, size = 0x8, scoped, tag = 'scoped memory for tpu_custom_call.1']
    #allocation7 [shape = 's32[2]{0}', space=sflag, size = 0x8, scoped, tag = 'scoped memory for tpu_custom_call.1']
    #allocation8 [shape = 'u8[49152]{0}', space=vmem, size = 0xc000, scoped, tag = 'output window, operand 0']
    %16 = vsyncpa [#allocation6], 0
    %s17 = scalar_lea.sflag [#allocation6], 1
    %18 = vsyncpa %s17, 0
    %19 = vsyncpa [#allocation7], 0
    %s20 = scalar_lea.sflag [#allocation7], 1
    %21 = vsyncpa %s20, 0
    loop: start=0, step=1, limit=6
    $region2: #{tpu_custom_call.1} parent=1 // loop_pre_header
      _
    $region3: #{tpu_custom_call.1} parent=1 // loop_header
      %s23 = sphi 0, %s27
      %p24 = scmp.ge.s32.totalorder %s23, 6
      %s33 = sphi 0, %s35
      %s36 = sphi 0, %s33
      %s37 = sphi 0, %s36
      %s53 = sphi 0, %s37
      %s59 = sphi 0, %s61
      %s62 = sphi 0, %s59
      %s63 = sphi 0, %s62
      %s79 = sphi 0, %s63
    $region4: #{tpu_custom_call.1} parent=1 // loop_header_branch
      %26 = sbr.rel (%p24) target = $region8
    $region5: #{tpu_custom_call.1} parent=1 // loop_body
      %s28 = ssub.s32 %s23, 1
      %s29 = ssub.s32 %s23, 2
      %s30 = sadd.s32 %s23, 1
      %s31 = ssub.s32 %s23, %s30
      %p32 = scmp.eq.s32.totalorder %s31, 0
      %s34 = sadd.s32 %s33, 1
      %s35 = scalar_select %p32, %s33, %s34
      %p38 = pneg %p32
      %p39 = scmp.eq.s32.totalorder %s23, 3
      %p40 = por %p38, %p39
      %p41 = scmp.ne.s32.totalorder %s33, %s36
      %p42 = scmp.eq.s32.totalorder %s23, 0
      %p43 = por %p41, %p42
      %p44 = scmp.ne.s32.totalorder %s33, %s36
      %p45 = scmp.eq.s32.totalorder %s28, 3
      %p46 = por %p44, %p45
      %p47 = scmp.ne.s32.totalorder %s36, %s37
      %p48 = scmp.eq.s32.totalorder %s28, 0
      %p49 = por %p47, %p48
      %p50 = scmp.ne.s32.totalorder %s36, %s37
      %p51 = scmp.eq.s32.totalorder %s29, 3
      %p52 = por %p50, %p51
      %p54 = scmp.ne.s32.totalorder %s37, %s53
      %p55 = scmp.eq.s32.totalorder %s29, 0
      %p56 = por %p54, %p55
      %s57 = ssub.s32 %s23, %s30
      %p58 = scmp.eq.s32.totalorder %s57, 0
      %s60 = sadd.s32 %s59, 1
      %s61 = scalar_select %p58, %s59, %s60
      %p64 = pneg %p58
      %p65 = scmp.eq.s32.totalorder %s23, 3
      %p66 = por %p64, %p65
      %p67 = scmp.ne.s32.totalorder %s59, %s62
      %p68 = scmp.eq.s32.totalorder %s23, 0
      %p69 = por %p67, %p68
      %p70 = scmp.ne.s32.totalorder %s59, %s62
      %p71 = scmp.eq.s32.totalorder %s28, 3
      %p72 = por %p70, %p71
      %p73 = scmp.ne.s32.totalorder %s62, %s63
      %p74 = scmp.eq.s32.totalorder %s28, 0
      %p75 = por %p73, %p74
      %p76 = scmp.ne.s32.totalorder %s62, %s63
      %p77 = scmp.eq.s32.totalorder %s29, 3
      %p78 = por %p76, %p77
      %p80 = scmp.ne.s32.totalorder %s63, %s79
      %p81 = scmp.eq.s32.totalorder %s29, 0
      %p82 = por %p80, %p81
      %p83 = scmp.le.s32.totalorder 1, %s23
      %p84 = scmp.lt.s32.totalorder %s23, 5
      %p85 = pnand %p83, %p84
      %p86 = pneg %p85
      // Predicated region
      $region9: #{tpu_custom_call.1} parent=5 // pred_check
        _
      $region10: #{tpu_custom_call.1} parent=5 // pred_check_branch
        %88 = sbr.rel (%p85) target = $region12
      $region11: #{tpu_custom_call.1} parent=5 // pred_region
        %s89 = ssub.s32 %s23, 1
      $region12: #{tpu_custom_call.1} parent=5 // pred_fallthru
        _
      %p90 = scmp.lt.s32.totalorder %s23, 4
      // Predicated region
      $region13: #{tpu_custom_call.1} parent=5 // pred_check
        %p91 = pneg %p90
      $region14: #{tpu_custom_call.1} parent=5 // pred_check_branch
        %93 = sbr.rel (%p91) target = $region16
      $region15: #{tpu_custom_call.1} parent=5 // pred_region
        // Predicated region
        $region17: #{tpu_custom_call.1} parent=15 // pred_check
          %p94 = pneg %p43
        $region18: #{tpu_custom_call.1} parent=15 // pred_check_branch
          %96 = sbr.rel (%p94) target = $region20
        $region19: #{tpu_custom_call.1} parent=15 // pred_region
          %s97 = sand.u32 %s33, 1
          %s98 = scalar_lea.sflag [#allocation6], %s97
          %s99 = sand.u32 %s33, 1
          %s100 = smul.addr %s99, 48
          %s101 = scalar_lea.vmem [#allocation5], %s100
          %s103 = ssub.s32 768, 768
          %104 = vsyncadd %s98, %s103
          %s105 = smul.addr %s23, 6
          %s106 = smul.addr %s105, 128
          %s107 = scalar_lea.hbm %s2, %s106
          %s108 = sshll.u32 %s101, 4
          %s109 = int_to_ptr.vmem [resolvable:$true] %s108
          %114 = dma.hbm_to_vmem [thread:$0]  %s107, 768, %s109, %s98, 128, 128, 8
        $region20: #{tpu_custom_call.1} parent=15 // pred_fallthru
          _
      $region16: #{tpu_custom_call.1} parent=5 // pred_fallthru
        _
      %p115 = scmp.le.s32.totalorder 1, %s23
      %p116 = scmp.lt.s32.totalorder %s23, 5
      %p117 = pnand %p115, %p116
      %p118 = pneg %p117
      // Predicated region
      $region21: #{tpu_custom_call.1} parent=5 // pred_check
        _
      $region22: #{tpu_custom_call.1} parent=5 // pred_check_branch
        %120 = sbr.rel (%p117) target = $region24
      $region23: #{tpu_custom_call.1} parent=5 // pred_region
        %s121 = ssub.s32 %s23, 1
        %s122 = sand.u32 %s36, 1
        %s123 = scalar_lea.sflag [#allocation6], %s122
        %s124 = sand.u32 %s36, 1
        %s125 = smul.addr %s124, 48
        %s126 = scalar_lea.vmem [#allocation5], %s125
        // Predicated region
        $region25: #{tpu_custom_call.1} parent=23 // pred_check
          %p127 = pneg %p49
        $region26: #{tpu_custom_call.1} parent=23 // pred_check_branch
          %129 = sbr.rel (%p127) target = $region28
        $region27: #{tpu_custom_call.1} parent=23 // pred_region
          %130 = dma.done %s123, 768
        $region28: #{tpu_custom_call.1} parent=23 // pred_fallthru
          _
        %s131 = sand.u32 %s36, 1
        %s132 = scalar_lea.sflag [#allocation6], %s131
        %s133 = sand.u32 %s36, 1
        %s134 = smul.addr %s133, 48
        %s135 = scalar_lea.vmem [#allocation5], %s134
        %p136 = pneg %p49
        %p137 = pneg %p46
        %p138 = pneg %p75
        %p139 = pneg %p72
        %s140 = sand.u32 %s62, 1
        %s141 = scalar_lea.sflag [#allocation7], %s140
        %s142 = sand.u32 %s62, 1
        %s143 = smul.addr %s142, 48
        %s144 = scalar_lea.vmem [#allocation8], %s143
        %s145 = sld [smem:[#allocation3 + %s28]]
        %s146 = sld [smem:[#allocation4 + %s28]]
        %v147 = vld [vmem:[%s126] sm:$0xff]
        %v148 = vld [vmem:[%s126 + $0x8] sm:$0xff]
        %v149 = vld [vmem:[%s126 + $0x10] sm:$0xff]
        %v150 = vld [vmem:[%s126 + $0x18] sm:$0xff]
        %v151 = vld [vmem:[%s126 + $0x20] sm:$0xff]
        %v152 = vld [vmem:[%s126 + $0x28] sm:$0xff]
        %v153 = vmul.f32 %v147, 255.0
        %v154 = vmul.f32 %v148, 255.0
        %v155 = vmul.f32 %v149, 255.0
        %v156 = vmul.f32 %v150, 255.0
        %v157 = vmul.f32 %v151, 255.0
        %v158 = vmul.f32 %v152, 255.0
        %v159 = vfloor.f32 %v153
        %v160 = vfloor.f32 %v154
        %v161 = vfloor.f32 %v155
        %v162 = vfloor.f32 %v156
        %v163 = vfloor.f32 %v157
        %v164 = vfloor.f32 %v158
        %p165 = scmp.eq.s32.totalorder %s145, 0
        // Predicated region
        $region29: #{tpu_custom_call.1} parent=23 // pred_check
          %p166 = pneg %p165
        $region30: #{tpu_custom_call.1} parent=23 // pred_check_branch
          %168 = sbr.rel (%p166) target = $region32
        $region31: #{tpu_custom_call.1} parent=23 // pred_region
          %v169 = vlaneseq
          %v170 = vshrl.u32 %v169, 7
          %v171 = vadd.s32 %v170, 8
          %v172 = vlaneseq
          %v173 = vand.u32 %v172, 127
          %174 = vrot.lane.b32.xlu0 %v159, 1
          %v175 = vpop.permute.xlu0 %174
          %176 = vrot.lane.b32.xlu0 %v160, 1
          %v177 = vpop.permute.xlu0 %176
          %178 = vrot.lane.b32.xlu0 %v161, 1
          %v179 = vpop.permute.xlu0 %178
          %180 = vrot.lane.b32.xlu0 %v162, 1
          %v181 = vpop.permute.xlu0 %180
          %182 = vrot.lane.b32.xlu0 %v163, 1
          %v183 = vpop.permute.xlu0 %182
          %184 = vrot.lane.b32.xlu0 %v164, 1
          %v185 = vpop.permute.xlu0 %184
          %186 = vrot.lane.b32.xlu0 %v159, 127
          %v187 = vpop.permute.xlu0 %186
          %188 = vrot.lane.b32.xlu0 %v160, 127
          %v189 = vpop.permute.xlu0 %188
          %190 = vrot.lane.b32.xlu0 %v161, 127
          %v191 = vpop.permute.xlu0 %190
          %192 = vrot.lane.b32.xlu0 %v162, 127
          %v193 = vpop.permute.xlu0 %192
          %194 = vrot.lane.b32.xlu0 %v163, 127
          %v195 = vpop.permute.xlu0 %194
          %196 = vrot.lane.b32.xlu0 %v164, 127
          %v197 = vpop.permute.xlu0 %196
          %vm198 = vcmp.eq.s32.totalorder %v173, 0
          %v199 = vsel %vm198, %v187, %v175
          %v200 = vsel %vm198, %v189, %v177
          %v201 = vsel %vm198, %v191, %v179
          %v202 = vsel %vm198, %v193, %v181
          %v203 = vsel %vm198, %v195, %v183
          %v204 = vsel %vm198, %v197, %v185
          %vm205 = vcmp.eq.s32.totalorder %v173, 15
          %v206 = vsel %vm205, %v175, %v187
          %v207 = vsel %vm205, %v177, %v189
          %v208 = vsel %vm205, %v179, %v191
          %v209 = vsel %vm205, %v181, %v193
          %v210 = vsel %vm205, %v183, %v195
          %v211 = vsel %vm205, %v185, %v197
          %v212 = vmul.f32 %v199, 0.25
          %v213 = vmul.f32 %v200, 0.25
          %v214 = vmul.f32 %v201, 0.25
          %v215 = vmul.f32 %v202, 0.25
          %v216 = vmul.f32 %v203, 0.25
          %v217 = vmul.f32 %v204, 0.25
          %v218 = vmul.f32 %v159, 0.5
          %v219 = vmul.f32 %v160, 0.5
          %v220 = vmul.f32 %v161, 0.5
          %v221 = vmul.f32 %v162, 0.5
          %v222 = vmul.f32 %v163, 0.5
          %v223 = vmul.f32 %v164, 0.5
          %v224 = vadd.f32 %v212, %v218
          %v225 = vadd.f32 %v213, %v219
          %v226 = vadd.f32 %v214, %v220
          %v227 = vadd.f32 %v215, %v221
          %v228 = vadd.f32 %v216, %v222
          %v229 = vadd.f32 %v217, %v223
          %v230 = vmul.f32 %v206, 0.25
          %v231 = vmul.f32 %v207, 0.25
          %v232 = vmul.f32 %v208, 0.25
          %v233 = vmul.f32 %v209, 0.25
          %v234 = vmul.f32 %v210, 0.25
          %v235 = vmul.f32 %v211, 0.25
          %v236 = vadd.f32 %v224, %v230
          %v237 = vadd.f32 %v225, %v231
          %v238 = vadd.f32 %v226, %v232
          %v239 = vadd.f32 %v227, %v233
          %v240 = vadd.f32 %v228, %v234
          %v241 = vadd.f32 %v229, %v235
          %v242 = vrot.slane %v236, 7
          %v243 = vrot.slane %v238, 7
          %v244 = vrot.slane %v240, 7
          %v245 = vrot.slane %v237, 7
          %v246 = vrot.slane %v239, 7
          %v247 = vrot.slane %v241, 7
          %vm248 = vcmp.lt.s32.totalorder %v170, 1
          %v249 = vsel %vm248, %v242, %v245
          %v250 = vsel %vm248, %v243, %v246
          %v251 = vsel %vm248, %v244, %v247
          %v252 = vsel %vm248, %v245, %v242
          %v253 = vsel %vm248, %v246, %v243
          %v254 = vsel %vm248, %v247, %v244
          %v255 = vrot.slane %v236, 1
          %v256 = vrot.slane %v238, 1
          %v257 = vrot.slane %v240, 1
          %v258 = vrot.slane %v237, 1
          %v259 = vrot.slane %v239, 1
          %v260 = vrot.slane %v241, 1
          %vm261 = vcmp.lt.s32.totalorder %v170, 7
          %v262 = vsel %vm261, %v255, %v258
          %v263 = vsel %vm261, %v256, %v259
          %v264 = vsel %vm261, %v257, %v260
          %v265 = vsel %vm261, %v258, %v255
          %v266 = vsel %vm261, %v259, %v256
          %v267 = vsel %vm261, %v260, %v257
          %vm268 = vcmp.eq.s32.totalorder %v170, 0
          %vm269 = vcmp.eq.s32.totalorder %v171, 0
          %v270 = vsel %vm268, %v262, %v252
          %v271 = vsel %vm269, %v265, %v249
          %v272 = vsel %vm268, %v263, %v253
          %v273 = vsel %vm269, %v266, %v250
          %v274 = vsel %vm268, %v264, %v254
          %v275 = vsel %vm269, %v267, %v251
          %vm276 = vcmp.eq.s32.totalorder %v170, 15
          %vm277 = vcmp.eq.s32.totalorder %v171, 15
          %v278 = vsel %vm276, %v252, %v262
          %v279 = vsel %vm277, %v249, %v265
          %v280 = vsel %vm276, %v253, %v263
          %v281 = vsel %vm277, %v250, %v266
          %v282 = vsel %vm276, %v254, %v264
          %v283 = vsel %vm277, %v251, %v267
          %v284 = vmul.f32 %v270, 0.25
          %v285 = vmul.f32 %v271, 0.25
          %v286 = vmul.f32 %v272, 0.25
          %v287 = vmul.f32 %v273, 0.25
          %v288 = vmul.f32 %v274, 0.25
          %v289 = vmul.f32 %v275, 0.25
          %v290 = vmul.f32 %v236, 0.5
          %v291 = vmul.f32 %v237, 0.5
          %v292 = vmul.f32 %v238, 0.5
          %v293 = vmul.f32 %v239, 0.5
          %v294 = vmul.f32 %v240, 0.5
          %v295 = vmul.f32 %v241, 0.5
          %v296 = vadd.f32 %v284, %v290
          %v297 = vadd.f32 %v285, %v291
          %v298 = vadd.f32 %v286, %v292
          %v299 = vadd.f32 %v287, %v293
          %v300 = vadd.f32 %v288, %v294
          %v301 = vadd.f32 %v289, %v295
          %v302 = vmul.f32 %v278, 0.25
          %v303 = vmul.f32 %v279, 0.25
          %v304 = vmul.f32 %v280, 0.25
          %v305 = vmul.f32 %v281, 0.25
          %v306 = vmul.f32 %v282, 0.25
          %v307 = vmul.f32 %v283, 0.25
          %v308 = vadd.f32 %v296, %v302
          %v309 = vadd.f32 %v297, %v303
          %v310 = vadd.f32 %v298, %v304
          %v311 = vadd.f32 %v299, %v305
          %v312 = vadd.f32 %v300, %v306
          %v313 = vadd.f32 %v301, %v307
          %v314 = vadd.f32 %v308, 0.5
          %v315 = vadd.f32 %v309, 0.5
          %v316 = vadd.f32 %v310, 0.5
          %v317 = vadd.f32 %v311, 0.5
          %v318 = vadd.f32 %v312, 0.5
          %v319 = vadd.f32 %v313, 0.5
          %v320 = vfloor.f32 %v314
          %v321 = vfloor.f32 %v315
          %v322 = vfloor.f32 %v316
          %v323 = vfloor.f32 %v317
          %v324 = vfloor.f32 %v318
          %v325 = vfloor.f32 %v319
          %v326 = vmax.f32 %v320, 0.0
          %v327 = vmax.f32 %v321, 0.0
          %v328 = vmax.f32 %v322, 0.0
          %v329 = vmax.f32 %v323, 0.0
          %v330 = vmax.f32 %v324, 0.0
          %v331 = vmax.f32 %v325, 0.0
          %v332 = vmin.f32 %v326, 255.0
          %v333 = vmin.f32 %v327, 255.0
          %v334 = vmin.f32 %v328, 255.0
          %v335 = vmin.f32 %v329, 255.0
          %v336 = vmin.f32 %v330, 255.0
          %v337 = vmin.f32 %v331, 255.0
          %v338 = vmul.f32 %v332, 0.003921569
          %v339 = vmul.f32 %v333, 0.003921569
          %v340 = vmul.f32 %v334, 0.003921569
          %v341 = vmul.f32 %v335, 0.003921569
          %v342 = vmul.f32 %v336, 0.003921569
          %v343 = vmul.f32 %v337, 0.003921569
          %344 = vst [vmem:[%s144] sm:$0xff] %v338
          %345 = vst [vmem:[%s144 + $0x8] sm:$0xff] %v339
          %346 = vst [vmem:[%s144 + $0x10] sm:$0xff] %v340
          %347 = vst [vmem:[%s144 + $0x18] sm:$0xff] %v341
          %348 = vst [vmem:[%s144 + $0x20] sm:$0xff] %v342
          %349 = vst [vmem:[%s144 + $0x28] sm:$0xff] %v343
        $region32: #{tpu_custom_call.1} parent=23 // pred_fallthru
          _
        %p350 = scmp.eq.s32.totalorder %s145, 1
        // Predicated region
        $region33: #{tpu_custom_call.1} parent=23 // pred_check
          %p351 = pneg %p350
        $region34: #{tpu_custom_call.1} parent=23 // pred_check_branch
          %353 = sbr.rel (%p351) target = $region36
        $region35: #{tpu_custom_call.1} parent=23 // pred_region
          %v354 = vlaneseq
          %v355 = vshrl.u32 %v354, 7
          %v356 = vadd.s32 %v355, 8
          %v357 = vlaneseq
          %v358 = vand.u32 %v357, 127
          %v359 = vadd.s32 %v355, 16
          %v360 = vadd.s32 %v356, 16
          %v361 = vadd.s32 %v355, 32
          %v362 = vadd.s32 %v356, 32
          %v363 = vmul.u32 %v355, 128
          %v364 = vmul.u32 %v356, 128
          %v365 = vmul.u32 %v359, 128
          %v366 = vmul.u32 %v360, 128
          %v367 = vmul.u32 %v361, 128
          %v368 = vmul.u32 %v362, 128
          %v369 = vadd.s32 %v363, %v358
          %v370 = vadd.s32 %v364, %v358
          %v371 = vadd.s32 %v365, %v358
          %v372 = vadd.s32 %v366, %v358
          %v373 = vadd.s32 %v367, %v358
          %v374 = vadd.s32 %v368, %v358
          %s375 = smul.u32 %s146, 2654435769
          %v376 = vstv %s375
          %v377 = vadd.s32 %v369, %v376
          %v378 = vadd.s32 %v370, %v376
          %v379 = vadd.s32 %v371, %v376
          %v380 = vadd.s32 %v372, %v376
          %v381 = vadd.s32 %v373, %v376
          %v382 = vadd.s32 %v374, %v376
          %v383 = vadd.s32 %v377, 2654435769
          %v384 = vadd.s32 %v378, 2654435769
          %v385 = vadd.s32 %v379, 2654435769
          %v386 = vadd.s32 %v380, 2654435769
          %v387 = vadd.s32 %v381, 2654435769
          %v388 = vadd.s32 %v382, 2654435769
          %v389 = vshra.s32 %v383, 16
          %v390 = vshra.s32 %v384, 16
          %v391 = vshra.s32 %v385, 16
          %v392 = vshra.s32 %v386, 16
          %v393 = vshra.s32 %v387, 16
          %v394 = vshra.s32 %v388, 16
          %v395 = vand.u32 %v389, 65535
          %v396 = vand.u32 %v390, 65535
          %v397 = vand.u32 %v391, 65535
          %v398 = vand.u32 %v392, 65535
          %v399 = vand.u32 %v393, 65535
          %v400 = vand.u32 %v394, 65535
          %v401 = vxor.u32 %v383, %v395
          %v402 = vxor.u32 %v384, %v396
          %v403 = vxor.u32 %v385, %v397
          %v404 = vxor.u32 %v386, %v398
          %v405 = vxor.u32 %v387, %v399
          %v406 = vxor.u32 %v388, %v400
          %v407 = vmul.u32 %v401, 2246822507
          %v408 = vmul.u32 %v402, 2246822507
          %v409 = vmul.u32 %v403, 2246822507
          %v410 = vmul.u32 %v404, 2246822507
          %v411 = vmul.u32 %v405, 2246822507
          %v412 = vmul.u32 %v406, 2246822507
          %v413 = vshra.s32 %v407, 13
          %v414 = vshra.s32 %v408, 13
          %v415 = vshra.s32 %v409, 13
          %v416 = vshra.s32 %v410, 13
          %v417 = vshra.s32 %v411, 13
          %v418 = vshra.s32 %v412, 13
          %v419 = vand.u32 %v413, 524287
          %v420 = vand.u32 %v414, 524287
          %v421 = vand.u32 %v415, 524287
          %v422 = vand.u32 %v416, 524287
          %v423 = vand.u32 %v417, 524287
          %v424 = vand.u32 %v418, 524287
          %v425 = vxor.u32 %v407, %v419
          %v426 = vxor.u32 %v408, %v420
          %v427 = vxor.u32 %v409, %v421
          %v428 = vxor.u32 %v410, %v422
          %v429 = vxor.u32 %v411, %v423
          %v430 = vxor.u32 %v412, %v424
          %v431 = vmul.u32 %v425, 3266489909
          %v432 = vmul.u32 %v426, 3266489909
          %v433 = vmul.u32 %v427, 3266489909
          %v434 = vmul.u32 %v428, 3266489909
          %v435 = vmul.u32 %v429, 3266489909
          %v436 = vmul.u32 %v430, 3266489909
          %v437 = vshra.s32 %v431, 16
          %v438 = vshra.s32 %v432, 16
          %v439 = vshra.s32 %v433, 16
          %v440 = vshra.s32 %v434, 16
          %v441 = vshra.s32 %v435, 16
          %v442 = vshra.s32 %v436, 16
          %v443 = vand.u32 %v437, 65535
          %v444 = vand.u32 %v438, 65535
          %v445 = vand.u32 %v439, 65535
          %v446 = vand.u32 %v440, 65535
          %v447 = vand.u32 %v441, 65535
          %v448 = vand.u32 %v442, 65535
          %v449 = vxor.u32 %v431, %v443
          %v450 = vxor.u32 %v432, %v444
          %v451 = vxor.u32 %v433, %v445
          %v452 = vxor.u32 %v434, %v446
          %v453 = vxor.u32 %v435, %v447
          %v454 = vxor.u32 %v436, %v448
          %v455 = vand.u32 %v449, 65535
          %v456 = vand.u32 %v450, 65535
          %v457 = vand.u32 %v451, 65535
          %v458 = vand.u32 %v452, 65535
          %v459 = vand.u32 %v453, 65535
          %v460 = vand.u32 %v454, 65535
          %v461 = vcvt.s32.f32 %v455
          %v462 = vcvt.s32.f32 %v456
          %v463 = vcvt.s32.f32 %v457
          %v464 = vcvt.s32.f32 %v458
          %v465 = vcvt.s32.f32 %v459
          %v466 = vcvt.s32.f32 %v460
          %v467 = vshra.s32 %v449, 16
          %v468 = vshra.s32 %v450, 16
          %v469 = vshra.s32 %v451, 16
          %v470 = vshra.s32 %v452, 16
          %v471 = vshra.s32 %v453, 16
          %v472 = vshra.s32 %v454, 16
          %v473 = vand.u32 %v467, 65535
          %v474 = vand.u32 %v468, 65535
          %v475 = vand.u32 %v469, 65535
          %v476 = vand.u32 %v470, 65535
          %v477 = vand.u32 %v471, 65535
          %v478 = vand.u32 %v472, 65535
          %v479 = vcvt.s32.f32 %v473
          %v480 = vcvt.s32.f32 %v474
          %v481 = vcvt.s32.f32 %v475
          %v482 = vcvt.s32.f32 %v476
          %v483 = vcvt.s32.f32 %v477
          %v484 = vcvt.s32.f32 %v478
          %v485 = vadd.f32 %v461, 0.0
          %v486 = vadd.f32 %v462, 0.0
          %v487 = vadd.f32 %v463, 0.0
          %v488 = vadd.f32 %v464, 0.0
          %v489 = vadd.f32 %v465, 0.0
          %v490 = vadd.f32 %v466, 0.0
          %v491 = vadd.f32 %v485, %v479
          %v492 = vadd.f32 %v486, %v480
          %v493 = vadd.f32 %v487, %v481
          %v494 = vadd.f32 %v488, %v482
          %v495 = vadd.f32 %v489, %v483
          %v496 = vadd.f32 %v490, %v484
          %v497 = vadd.s32 %v377, 1013904242
          %v498 = vadd.s32 %v378, 1013904242
          %v499 = vadd.s32 %v379, 1013904242
          %v500 = vadd.s32 %v380, 1013904242
          %v501 = vadd.s32 %v381, 1013904242
          %v502 = vadd.s32 %v382, 1013904242
          %v503 = vshra.s32 %v497, 16
          %v504 = vshra.s32 %v498, 16
          %v505 = vshra.s32 %v499, 16
          %v506 = vshra.s32 %v500, 16
          %v507 = vshra.s32 %v501, 16
          %v508 = vshra.s32 %v502, 16
          %v509 = vand.u32 %v503, 65535
          %v510 = vand.u32 %v504, 65535
          %v511 = vand.u32 %v505, 65535
          %v512 = vand.u32 %v506, 65535
          %v513 = vand.u32 %v507, 65535
          %v514 = vand.u32 %v508, 65535
          %v515 = vxor.u32 %v497, %v509
          %v516 = vxor.u32 %v498, %v510
          %v517 = vxor.u32 %v499, %v511
          %v518 = vxor.u32 %v500, %v512
          %v519 = vxor.u32 %v501, %v513
          %v520 = vxor.u32 %v502, %v514
          %v521 = vmul.u32 %v515, 2246822507
          %v522 = vmul.u32 %v516, 2246822507
          %v523 = vmul.u32 %v517, 2246822507
          %v524 = vmul.u32 %v518, 2246822507
          %v525 = vmul.u32 %v519, 2246822507
          %v526 = vmul.u32 %v520, 2246822507
          %v527 = vshra.s32 %v521, 13
          %v528 = vshra.s32 %v522, 13
          %v529 = vshra.s32 %v523, 13
          %v530 = vshra.s32 %v524, 13
          %v531 = vshra.s32 %v525, 13
          %v532 = vshra.s32 %v526, 13
          %v533 = vand.u32 %v527, 524287
          %v534 = vand.u32 %v528, 524287
          %v535 = vand.u32 %v529, 524287
          %v536 = vand.u32 %v530, 524287
          %v537 = vand.u32 %v531, 524287
          %v538 = vand.u32 %v532, 524287
          %v539 = vxor.u32 %v521, %v533
          %v540 = vxor.u32 %v522, %v534
          %v541 = vxor.u32 %v523, %v535
          %v542 = vxor.u32 %v524, %v536
          %v543 = vxor.u32 %v525, %v537
          %v544 = vxor.u32 %v526, %v538
          %v545 = vmul.u32 %v539, 3266489909
          %v546 = vmul.u32 %v540, 3266489909
          %v547 = vmul.u32 %v541, 3266489909
          %v548 = vmul.u32 %v542, 3266489909
          %v549 = vmul.u32 %v543, 3266489909
          %v550 = vmul.u32 %v544, 3266489909
          %v551 = vshra.s32 %v545, 16
          %v552 = vshra.s32 %v546, 16
          %v553 = vshra.s32 %v547, 16
          %v554 = vshra.s32 %v548, 16
          %v555 = vshra.s32 %v549, 16
          %v556 = vshra.s32 %v550, 16
          %v557 = vand.u32 %v551, 65535
          %v558 = vand.u32 %v552, 65535
          %v559 = vand.u32 %v553, 65535
          %v560 = vand.u32 %v554, 65535
          %v561 = vand.u32 %v555, 65535
          %v562 = vand.u32 %v556, 65535
          %v563 = vxor.u32 %v545, %v557
          %v564 = vxor.u32 %v546, %v558
          %v565 = vxor.u32 %v547, %v559
          %v566 = vxor.u32 %v548, %v560
          %v567 = vxor.u32 %v549, %v561
          %v568 = vxor.u32 %v550, %v562
          %v569 = vand.u32 %v563, 65535
          %v570 = vand.u32 %v564, 65535
          %v571 = vand.u32 %v565, 65535
          %v572 = vand.u32 %v566, 65535
          %v573 = vand.u32 %v567, 65535
          %v574 = vand.u32 %v568, 65535
          %v575 = vcvt.s32.f32 %v569
          %v576 = vcvt.s32.f32 %v570
          %v577 = vcvt.s32.f32 %v571
          %v578 = vcvt.s32.f32 %v572
          %v579 = vcvt.s32.f32 %v573
          %v580 = vcvt.s32.f32 %v574
          %v581 = vshra.s32 %v563, 16
          %v582 = vshra.s32 %v564, 16
          %v583 = vshra.s32 %v565, 16
          %v584 = vshra.s32 %v566, 16
          %v585 = vshra.s32 %v567, 16
          %v586 = vshra.s32 %v568, 16
          %v587 = vand.u32 %v581, 65535
          %v588 = vand.u32 %v582, 65535
          %v589 = vand.u32 %v583, 65535
          %v590 = vand.u32 %v584, 65535
          %v591 = vand.u32 %v585, 65535
          %v592 = vand.u32 %v586, 65535
          %v593 = vcvt.s32.f32 %v587
          %v594 = vcvt.s32.f32 %v588
          %v595 = vcvt.s32.f32 %v589
          %v596 = vcvt.s32.f32 %v590
          %v597 = vcvt.s32.f32 %v591
          %v598 = vcvt.s32.f32 %v592
          %v599 = vadd.f32 %v491, %v575
          %v600 = vadd.f32 %v492, %v576
          %v601 = vadd.f32 %v493, %v577
          %v602 = vadd.f32 %v494, %v578
          %v603 = vadd.f32 %v495, %v579
          %v604 = vadd.f32 %v496, %v580
          %v605 = vadd.f32 %v599, %v593
          %v606 = vadd.f32 %v600, %v594
          %v607 = vadd.f32 %v601, %v595
          %v608 = vadd.f32 %v602, %v596
          %v609 = vadd.f32 %v603, %v597
          %v610 = vadd.f32 %v604, %v598
          %v611 = vadd.s32 %v377, 3668340011
          %v612 = vadd.s32 %v378, 3668340011
          %v613 = vadd.s32 %v379, 3668340011
          %v614 = vadd.s32 %v380, 3668340011
          %v615 = vadd.s32 %v381, 3668340011
          %v616 = vadd.s32 %v382, 3668340011
          %v617 = vshra.s32 %v611, 16
          %v618 = vshra.s32 %v612, 16
          %v619 = vshra.s32 %v613, 16
          %v620 = vshra.s32 %v614, 16
          %v621 = vshra.s32 %v615, 16
          %v622 = vshra.s32 %v616, 16
          %v623 = vand.u32 %v617, 65535
          %v624 = vand.u32 %v618, 65535
          %v625 = vand.u32 %v619, 65535
          %v626 = vand.u32 %v620, 65535
          %v627 = vand.u32 %v621, 65535
          %v628 = vand.u32 %v622, 65535
          %v629 = vxor.u32 %v611, %v623
          %v630 = vxor.u32 %v612, %v624
          %v631 = vxor.u32 %v613, %v625
          %v632 = vxor.u32 %v614, %v626
          %v633 = vxor.u32 %v615, %v627
          %v634 = vxor.u32 %v616, %v628
          %v635 = vmul.u32 %v629, 2246822507
          %v636 = vmul.u32 %v630, 2246822507
          %v637 = vmul.u32 %v631, 2246822507
          %v638 = vmul.u32 %v632, 2246822507
          %v639 = vmul.u32 %v633, 2246822507
          %v640 = vmul.u32 %v634, 2246822507
          %v641 = vshra.s32 %v635, 13
          %v642 = vshra.s32 %v636, 13
          %v643 = vshra.s32 %v637, 13
          %v644 = vshra.s32 %v638, 13
          %v645 = vshra.s32 %v639, 13
          %v646 = vshra.s32 %v640, 13
          %v647 = vand.u32 %v641, 524287
          %v648 = vand.u32 %v642, 524287
          %v649 = vand.u32 %v643, 524287
          %v650 = vand.u32 %v644, 524287
          %v651 = vand.u32 %v645, 524287
          %v652 = vand.u32 %v646, 524287
          %v653 = vxor.u32 %v635, %v647
          %v654 = vxor.u32 %v636, %v648
          %v655 = vxor.u32 %v637, %v649
          %v656 = vxor.u32 %v638, %v650
          %v657 = vxor.u32 %v639, %v651
          %v658 = vxor.u32 %v640, %v652
          %v659 = vmul.u32 %v653, 3266489909
          %v660 = vmul.u32 %v654, 3266489909
          %v661 = vmul.u32 %v655, 3266489909
          %v662 = vmul.u32 %v656, 3266489909
          %v663 = vmul.u32 %v657, 3266489909
          %v664 = vmul.u32 %v658, 3266489909
          %v665 = vshra.s32 %v659, 16
          %v666 = vshra.s32 %v660, 16
          %v667 = vshra.s32 %v661, 16
          %v668 = vshra.s32 %v662, 16
          %v669 = vshra.s32 %v663, 16
          %v670 = vshra.s32 %v664, 16
          %v671 = vand.u32 %v665, 65535
          %v672 = vand.u32 %v666, 65535
          %v673 = vand.u32 %v667, 65535
          %v674 = vand.u32 %v668, 65535
          %v675 = vand.u32 %v669, 65535
          %v676 = vand.u32 %v670, 65535
          %v677 = vxor.u32 %v659, %v671
          %v678 = vxor.u32 %v660, %v672
          %v679 = vxor.u32 %v661, %v673
          %v680 = vxor.u32 %v662, %v674
          %v681 = vxor.u32 %v663, %v675
          %v682 = vxor.u32 %v664, %v676
          %v683 = vand.u32 %v677, 65535
          %v684 = vand.u32 %v678, 65535
          %v685 = vand.u32 %v679, 65535
          %v686 = vand.u32 %v680, 65535
          %v687 = vand.u32 %v681, 65535
          %v688 = vand.u32 %v682, 65535
          %v689 = vcvt.s32.f32 %v683
          %v690 = vcvt.s32.f32 %v684
          %v691 = vcvt.s32.f32 %v685
          %v692 = vcvt.s32.f32 %v686
          %v693 = vcvt.s32.f32 %v687
          %v694 = vcvt.s32.f32 %v688
          %v695 = vshra.s32 %v677, 16
          %v696 = vshra.s32 %v678, 16
          %v697 = vshra.s32 %v679, 16
          %v698 = vshra.s32 %v680, 16
          %v699 = vshra.s32 %v681, 16
          %v700 = vshra.s32 %v682, 16
          %v701 = vand.u32 %v695, 65535
          %v702 = vand.u32 %v696, 65535
          %v703 = vand.u32 %v697, 65535
          %v704 = vand.u32 %v698, 65535
          %v705 = vand.u32 %v699, 65535
          %v706 = vand.u32 %v700, 65535
          %v707 = vcvt.s32.f32 %v701
          %v708 = vcvt.s32.f32 %v702
          %v709 = vcvt.s32.f32 %v703
          %v710 = vcvt.s32.f32 %v704
          %v711 = vcvt.s32.f32 %v705
          %v712 = vcvt.s32.f32 %v706
          %v713 = vadd.f32 %v605, %v689
          %v714 = vadd.f32 %v606, %v690
          %v715 = vadd.f32 %v607, %v691
          %v716 = vadd.f32 %v608, %v692
          %v717 = vadd.f32 %v609, %v693
          %v718 = vadd.f32 %v610, %v694
          %v719 = vadd.f32 %v713, %v707
          %v720 = vadd.f32 %v714, %v708
          %v721 = vadd.f32 %v715, %v709
          %v722 = vadd.f32 %v716, %v710
          %v723 = vadd.f32 %v717, %v711
          %v724 = vadd.f32 %v718, %v712
          %v725 = vadd.s32 %v377, 2027808484
          %v726 = vadd.s32 %v378, 2027808484
          %v727 = vadd.s32 %v379, 2027808484
          %v728 = vadd.s32 %v380, 2027808484
          %v729 = vadd.s32 %v381, 2027808484
          %v730 = vadd.s32 %v382, 2027808484
          %v731 = vshra.s32 %v725, 16
          %v732 = vshra.s32 %v726, 16
          %v733 = vshra.s32 %v727, 16
          %v734 = vshra.s32 %v728, 16
          %v735 = vshra.s32 %v729, 16
          %v736 = vshra.s32 %v730, 16
          %v737 = vand.u32 %v731, 65535
          %v738 = vand.u32 %v732, 65535
          %v739 = vand.u32 %v733, 65535
          %v740 = vand.u32 %v734, 65535
          %v741 = vand.u32 %v735, 65535
          %v742 = vand.u32 %v736, 65535
          %v743 = vxor.u32 %v725, %v737
          %v744 = vxor.u32 %v726, %v738
          %v745 = vxor.u32 %v727, %v739
          %v746 = vxor.u32 %v728, %v740
          %v747 = vxor.u32 %v729, %v741
          %v748 = vxor.u32 %v730, %v742
          %v749 = vmul.u32 %v743, 2246822507
          %v750 = vmul.u32 %v744, 2246822507
          %v751 = vmul.u32 %v745, 2246822507
          %v752 = vmul.u32 %v746, 2246822507
          %v753 = vmul.u32 %v747, 2246822507
          %v754 = vmul.u32 %v748, 2246822507
          %v755 = vshra.s32 %v749, 13
          %v756 = vshra.s32 %v750, 13
          %v757 = vshra.s32 %v751, 13
          %v758 = vshra.s32 %v752, 13
          %v759 = vshra.s32 %v753, 13
          %v760 = vshra.s32 %v754, 13
          %v761 = vand.u32 %v755, 524287
          %v762 = vand.u32 %v756, 524287
          %v763 = vand.u32 %v757, 524287
          %v764 = vand.u32 %v758, 524287
          %v765 = vand.u32 %v759, 524287
          %v766 = vand.u32 %v760, 524287
          %v767 = vxor.u32 %v749, %v761
          %v768 = vxor.u32 %v750, %v762
          %v769 = vxor.u32 %v751, %v763
          %v770 = vxor.u32 %v752, %v764
          %v771 = vxor.u32 %v753, %v765
          %v772 = vxor.u32 %v754, %v766
          %v773 = vmul.u32 %v767, 3266489909
          %v774 = vmul.u32 %v768, 3266489909
          %v775 = vmul.u32 %v769, 3266489909
          %v776 = vmul.u32 %v770, 3266489909
          %v777 = vmul.u32 %v771, 3266489909
          %v778 = vmul.u32 %v772, 3266489909
          %v779 = vshra.s32 %v773, 16
          %v780 = vshra.s32 %v774, 16
          %v781 = vshra.s32 %v775, 16
          %v782 = vshra.s32 %v776, 16
          %v783 = vshra.s32 %v777, 16
          %v784 = vshra.s32 %v778, 16
          %v785 = vand.u32 %v779, 65535
          %v786 = vand.u32 %v780, 65535
          %v787 = vand.u32 %v781, 65535
          %v788 = vand.u32 %v782, 65535
          %v789 = vand.u32 %v783, 65535
          %v790 = vand.u32 %v784, 65535
          %v791 = vxor.u32 %v773, %v785
          %v792 = vxor.u32 %v774, %v786
          %v793 = vxor.u32 %v775, %v787
          %v794 = vxor.u32 %v776, %v788
          %v795 = vxor.u32 %v777, %v789
          %v796 = vxor.u32 %v778, %v790
          %v797 = vand.u32 %v791, 65535
          %v798 = vand.u32 %v792, 65535
          %v799 = vand.u32 %v793, 65535
          %v800 = vand.u32 %v794, 65535
          %v801 = vand.u32 %v795, 65535
          %v802 = vand.u32 %v796, 65535
          %v803 = vcvt.s32.f32 %v797
          %v804 = vcvt.s32.f32 %v798
          %v805 = vcvt.s32.f32 %v799
          %v806 = vcvt.s32.f32 %v800
          %v807 = vcvt.s32.f32 %v801
          %v808 = vcvt.s32.f32 %v802
          %v809 = vshra.s32 %v791, 16
          %v810 = vshra.s32 %v792, 16
          %v811 = vshra.s32 %v793, 16
          %v812 = vshra.s32 %v794, 16
          %v813 = vshra.s32 %v795, 16
          %v814 = vshra.s32 %v796, 16
          %v815 = vand.u32 %v809, 65535
          %v816 = vand.u32 %v810, 65535
          %v817 = vand.u32 %v811, 65535
          %v818 = vand.u32 %v812, 65535
          %v819 = vand.u32 %v813, 65535
          %v820 = vand.u32 %v814, 65535
          %v821 = vcvt.s32.f32 %v815
          %v822 = vcvt.s32.f32 %v816
          %v823 = vcvt.s32.f32 %v817
          %v824 = vcvt.s32.f32 %v818
          %v825 = vcvt.s32.f32 %v819
          %v826 = vcvt.s32.f32 %v820
          %v827 = vadd.f32 %v719, %v803
          %v828 = vadd.f32 %v720, %v804
          %v829 = vadd.f32 %v721, %v805
          %v830 = vadd.f32 %v722, %v806
          %v831 = vadd.f32 %v723, %v807
          %v832 = vadd.f32 %v724, %v808
          %v833 = vadd.f32 %v827, %v821
          %v834 = vadd.f32 %v828, %v822
          %v835 = vadd.f32 %v829, %v823
          %v836 = vadd.f32 %v830, %v824
          %v837 = vadd.f32 %v831, %v825
          %v838 = vadd.f32 %v832, %v826
          %v839 = vadd.s32 %v377, 387276957
          %v840 = vadd.s32 %v378, 387276957
          %v841 = vadd.s32 %v379, 387276957
          %v842 = vadd.s32 %v380, 387276957
          %v843 = vadd.s32 %v381, 387276957
          %v844 = vadd.s32 %v382, 387276957
          %v845 = vshra.s32 %v839, 16
          %v846 = vshra.s32 %v840, 16
          %v847 = vshra.s32 %v841, 16
          %v848 = vshra.s32 %v842, 16
          %v849 = vshra.s32 %v843, 16
          %v850 = vshra.s32 %v844, 16
          %v851 = vand.u32 %v845, 65535
          %v852 = vand.u32 %v846, 65535
          %v853 = vand.u32 %v847, 65535
          %v854 = vand.u32 %v848, 65535
          %v855 = vand.u32 %v849, 65535
          %v856 = vand.u32 %v850, 65535
          %v857 = vxor.u32 %v839, %v851
          %v858 = vxor.u32 %v840, %v852
          %v859 = vxor.u32 %v841, %v853
          %v860 = vxor.u32 %v842, %v854
          %v861 = vxor.u32 %v843, %v855
          %v862 = vxor.u32 %v844, %v856
          %v863 = vmul.u32 %v857, 2246822507
          %v864 = vmul.u32 %v858, 2246822507
          %v865 = vmul.u32 %v859, 2246822507
          %v866 = vmul.u32 %v860, 2246822507
          %v867 = vmul.u32 %v861, 2246822507
          %v868 = vmul.u32 %v862, 2246822507
          %v869 = vshra.s32 %v863, 13
          %v870 = vshra.s32 %v864, 13
          %v871 = vshra.s32 %v865, 13
          %v872 = vshra.s32 %v866, 13
          %v873 = vshra.s32 %v867, 13
          %v874 = vshra.s32 %v868, 13
          %v875 = vand.u32 %v869, 524287
          %v876 = vand.u32 %v870, 524287
          %v877 = vand.u32 %v871, 524287
          %v878 = vand.u32 %v872, 524287
          %v879 = vand.u32 %v873, 524287
          %v880 = vand.u32 %v874, 524287
          %v881 = vxor.u32 %v863, %v875
          %v882 = vxor.u32 %v864, %v876
          %v883 = vxor.u32 %v865, %v877
          %v884 = vxor.u32 %v866, %v878
          %v885 = vxor.u32 %v867, %v879
          %v886 = vxor.u32 %v868, %v880
          %v887 = vmul.u32 %v881, 3266489909
          %v888 = vmul.u32 %v882, 3266489909
          %v889 = vmul.u32 %v883, 3266489909
          %v890 = vmul.u32 %v884, 3266489909
          %v891 = vmul.u32 %v885, 3266489909
          %v892 = vmul.u32 %v886, 3266489909
          %v893 = vshra.s32 %v887, 16
          %v894 = vshra.s32 %v888, 16
          %v895 = vshra.s32 %v889, 16
          %v896 = vshra.s32 %v890, 16
          %v897 = vshra.s32 %v891, 16
          %v898 = vshra.s32 %v892, 16
          %v899 = vand.u32 %v893, 65535
          %v900 = vand.u32 %v894, 65535
          %v901 = vand.u32 %v895, 65535
          %v902 = vand.u32 %v896, 65535
          %v903 = vand.u32 %v897, 65535
          %v904 = vand.u32 %v898, 65535
          %v905 = vxor.u32 %v887, %v899
          %v906 = vxor.u32 %v888, %v900
          %v907 = vxor.u32 %v889, %v901
          %v908 = vxor.u32 %v890, %v902
          %v909 = vxor.u32 %v891, %v903
          %v910 = vxor.u32 %v892, %v904
          %v911 = vand.u32 %v905, 65535
          %v912 = vand.u32 %v906, 65535
          %v913 = vand.u32 %v907, 65535
          %v914 = vand.u32 %v908, 65535
          %v915 = vand.u32 %v909, 65535
          %v916 = vand.u32 %v910, 65535
          %v917 = vcvt.s32.f32 %v911
          %v918 = vcvt.s32.f32 %v912
          %v919 = vcvt.s32.f32 %v913
          %v920 = vcvt.s32.f32 %v914
          %v921 = vcvt.s32.f32 %v915
          %v922 = vcvt.s32.f32 %v916
          %v923 = vshra.s32 %v905, 16
          %v924 = vshra.s32 %v906, 16
          %v925 = vshra.s32 %v907, 16
          %v926 = vshra.s32 %v908, 16
          %v927 = vshra.s32 %v909, 16
          %v928 = vshra.s32 %v910, 16
          %v929 = vand.u32 %v923, 65535
          %v930 = vand.u32 %v924, 65535
          %v931 = vand.u32 %v925, 65535
          %v932 = vand.u32 %v926, 65535
          %v933 = vand.u32 %v927, 65535
          %v934 = vand.u32 %v928, 65535
          %v935 = vcvt.s32.f32 %v929
          %v936 = vcvt.s32.f32 %v930
          %v937 = vcvt.s32.f32 %v931
          %v938 = vcvt.s32.f32 %v932
          %v939 = vcvt.s32.f32 %v933
          %v940 = vcvt.s32.f32 %v934
          %v941 = vadd.f32 %v833, %v917
          %v942 = vadd.f32 %v834, %v918
          %v943 = vadd.f32 %v835, %v919
          %v944 = vadd.f32 %v836, %v920
          %v945 = vadd.f32 %v837, %v921
          %v946 = vadd.f32 %v838, %v922
          %v947 = vadd.f32 %v941, %v935
          %v948 = vadd.f32 %v942, %v936
          %v949 = vadd.f32 %v943, %v937
          %v950 = vadd.f32 %v944, %v938
          %v951 = vadd.f32 %v945, %v939
          %v952 = vadd.f32 %v946, %v940
          %v953 = vadd.s32 %v377, 3041712726
          %v954 = vadd.s32 %v378, 3041712726
          %v955 = vadd.s32 %v379, 3041712726
          %v956 = vadd.s32 %v380, 3041712726
          %v957 = vadd.s32 %v381, 3041712726
          %v958 = vadd.s32 %v382, 3041712726
          %v959 = vshra.s32 %v953, 16
          %v960 = vshra.s32 %v954, 16
          %v961 = vshra.s32 %v955, 16
          %v962 = vshra.s32 %v956, 16
          %v963 = vshra.s32 %v957, 16
          %v964 = vshra.s32 %v958, 16
          %v965 = vand.u32 %v959, 65535
          %v966 = vand.u32 %v960, 65535
          %v967 = vand.u32 %v961, 65535
          %v968 = vand.u32 %v962, 65535
          %v969 = vand.u32 %v963, 65535
          %v970 = vand.u32 %v964, 65535
          %v971 = vxor.u32 %v953, %v965
          %v972 = vxor.u32 %v954, %v966
          %v973 = vxor.u32 %v955, %v967
          %v974 = vxor.u32 %v956, %v968
          %v975 = vxor.u32 %v957, %v969
          %v976 = vxor.u32 %v958, %v970
          %v977 = vmul.u32 %v971, 2246822507
          %v978 = vmul.u32 %v972, 2246822507
          %v979 = vmul.u32 %v973, 2246822507
          %v980 = vmul.u32 %v974, 2246822507
          %v981 = vmul.u32 %v975, 2246822507
          %v982 = vmul.u32 %v976, 2246822507
          %v983 = vshra.s32 %v977, 13
          %v984 = vshra.s32 %v978, 13
          %v985 = vshra.s32 %v979, 13
          %v986 = vshra.s32 %v980, 13
          %v987 = vshra.s32 %v981, 13
          %v988 = vshra.s32 %v982, 13
          %v989 = vand.u32 %v983, 524287
          %v990 = vand.u32 %v984, 524287
          %v991 = vand.u32 %v985, 524287
          %v992 = vand.u32 %v986, 524287
          %v993 = vand.u32 %v987, 524287
          %v994 = vand.u32 %v988, 524287
          %v995 = vxor.u32 %v977, %v989
          %v996 = vxor.u32 %v978, %v990
          %v997 = vxor.u32 %v979, %v991
          %v998 = vxor.u32 %v980, %v992
          %v999 = vxor.u32 %v981, %v993
          %v1000 = vxor.u32 %v982, %v994
          %v1001 = vmul.u32 %v995, 3266489909
          %v1002 = vmul.u32 %v996, 3266489909
          %v1003 = vmul.u32 %v997, 3266489909
          %v1004 = vmul.u32 %v998, 3266489909
          %v1005 = vmul.u32 %v999, 3266489909
          %v1006 = vmul.u32 %v1000, 3266489909
          %v1007 = vshra.s32 %v1001, 16
          %v1008 = vshra.s32 %v1002, 16
          %v1009 = vshra.s32 %v1003, 16
          %v1010 = vshra.s32 %v1004, 16
          %v1011 = vshra.s32 %v1005, 16
          %v1012 = vshra.s32 %v1006, 16
          %v1013 = vand.u32 %v1007, 65535
          %v1014 = vand.u32 %v1008, 65535
          %v1015 = vand.u32 %v1009, 65535
          %v1016 = vand.u32 %v1010, 65535
          %v1017 = vand.u32 %v1011, 65535
          %v1018 = vand.u32 %v1012, 65535
          %v1019 = vxor.u32 %v1001, %v1013
          %v1020 = vxor.u32 %v1002, %v1014
          %v1021 = vxor.u32 %v1003, %v1015
          %v1022 = vxor.u32 %v1004, %v1016
          %v1023 = vxor.u32 %v1005, %v1017
          %v1024 = vxor.u32 %v1006, %v1018
          %v1025 = vand.u32 %v1019, 65535
          %v1026 = vand.u32 %v1020, 65535
          %v1027 = vand.u32 %v1021, 65535
          %v1028 = vand.u32 %v1022, 65535
          %v1029 = vand.u32 %v1023, 65535
          %v1030 = vand.u32 %v1024, 65535
          %v1031 = vcvt.s32.f32 %v1025
          %v1032 = vcvt.s32.f32 %v1026
          %v1033 = vcvt.s32.f32 %v1027
          %v1034 = vcvt.s32.f32 %v1028
          %v1035 = vcvt.s32.f32 %v1029
          %v1036 = vcvt.s32.f32 %v1030
          %v1037 = vshra.s32 %v1019, 16
          %v1038 = vshra.s32 %v1020, 16
          %v1039 = vshra.s32 %v1021, 16
          %v1040 = vshra.s32 %v1022, 16
          %v1041 = vshra.s32 %v1023, 16
          %v1042 = vshra.s32 %v1024, 16
          %v1043 = vand.u32 %v1037, 65535
          %v1044 = vand.u32 %v1038, 65535
          %v1045 = vand.u32 %v1039, 65535
          %v1046 = vand.u32 %v1040, 65535
          %v1047 = vand.u32 %v1041, 65535
          %v1048 = vand.u32 %v1042, 65535
          %v1049 = vcvt.s32.f32 %v1043
          %v1050 = vcvt.s32.f32 %v1044
          %v1051 = vcvt.s32.f32 %v1045
          %v1052 = vcvt.s32.f32 %v1046
          %v1053 = vcvt.s32.f32 %v1047
          %v1054 = vcvt.s32.f32 %v1048
          %v1055 = vadd.f32 %v947, %v1031
          %v1056 = vadd.f32 %v948, %v1032
          %v1057 = vadd.f32 %v949, %v1033
          %v1058 = vadd.f32 %v950, %v1034
          %v1059 = vadd.f32 %v951, %v1035
          %v1060 = vadd.f32 %v952, %v1036
          %v1061 = vadd.f32 %v1055, %v1049
          %v1062 = vadd.f32 %v1056, %v1050
          %v1063 = vadd.f32 %v1057, %v1051
          %v1064 = vadd.f32 %v1058, %v1052
          %v1065 = vadd.f32 %v1059, %v1053
          %v1066 = vadd.f32 %v1060, %v1054
          %v1067 = vmul.f32 %v1061, 1.5258789e-05
          %v1068 = vmul.f32 %v1062, 1.5258789e-05
          %v1069 = vmul.f32 %v1063, 1.5258789e-05
          %v1070 = vmul.f32 %v1064, 1.5258789e-05
          %v1071 = vmul.f32 %v1065, 1.5258789e-05
          %v1072 = vmul.f32 %v1066, 1.5258789e-05
          %v1073 = vsub.f32 %v1067, 6.0
          %v1074 = vsub.f32 %v1068, 6.0
          %v1075 = vsub.f32 %v1069, 6.0
          %v1076 = vsub.f32 %v1070, 6.0
          %v1077 = vsub.f32 %v1071, 6.0
          %v1078 = vsub.f32 %v1072, 6.0
          %v1079 = vmul.f32 %v1073, 12.75
          %v1080 = vmul.f32 %v1074, 12.75
          %v1081 = vmul.f32 %v1075, 12.75
          %v1082 = vmul.f32 %v1076, 12.75
          %v1083 = vmul.f32 %v1077, 12.75
          %v1084 = vmul.f32 %v1078, 12.75
          %v1085 = vadd.f32 %v159, %v1079
          %v1086 = vadd.f32 %v160, %v1080
          %v1087 = vadd.f32 %v161, %v1081
          %v1088 = vadd.f32 %v162, %v1082
          %v1089 = vadd.f32 %v163, %v1083
          %v1090 = vadd.f32 %v164, %v1084
          %v1091 = vadd.f32 %v1085, 0.5
          %v1092 = vadd.f32 %v1086, 0.5
          %v1093 = vadd.f32 %v1087, 0.5
          %v1094 = vadd.f32 %v1088, 0.5
          %v1095 = vadd.f32 %v1089, 0.5
          %v1096 = vadd.f32 %v1090, 0.5
          %v1097 = vfloor.f32 %v1091
          %v1098 = vfloor.f32 %v1092
          %v1099 = vfloor.f32 %v1093
          %v1100 = vfloor.f32 %v1094
          %v1101 = vfloor.f32 %v1095
          %v1102 = vfloor.f32 %v1096
          %v1103 = vmax.f32 %v1097, 0.0
          %v1104 = vmax.f32 %v1098, 0.0
          %v1105 = vmax.f32 %v1099, 0.0
          %v1106 = vmax.f32 %v1100, 0.0
          %v1107 = vmax.f32 %v1101, 0.0
          %v1108 = vmax.f32 %v1102, 0.0
          %v1109 = vmin.f32 %v1103, 255.0
          %v1110 = vmin.f32 %v1104, 255.0
          %v1111 = vmin.f32 %v1105, 255.0
          %v1112 = vmin.f32 %v1106, 255.0
          %v1113 = vmin.f32 %v1107, 255.0
          %v1114 = vmin.f32 %v1108, 255.0
          %v1115 = vmul.f32 %v1109, 0.003921569
          %v1116 = vmul.f32 %v1110, 0.003921569
          %v1117 = vmul.f32 %v1111, 0.003921569
          %v1118 = vmul.f32 %v1112, 0.003921569
          %v1119 = vmul.f32 %v1113, 0.003921569
          %v1120 = vmul.f32 %v1114, 0.003921569
          %1121 = vst [vmem:[%s144] sm:$0xff] %v1115
          %1122 = vst [vmem:[%s144 + $0x8] sm:$0xff] %v1116
          %1123 = vst [vmem:[%s144 + $0x10] sm:$0xff] %v1117
          %1124 = vst [vmem:[%s144 + $0x18] sm:$0xff] %v1118
          %1125 = vst [vmem:[%s144 + $0x20] sm:$0xff] %v1119
          %1126 = vst [vmem:[%s144 + $0x28] sm:$0xff] %v1120
        $region36: #{tpu_custom_call.1} parent=23 // pred_fallthru
          _
        %p1127 = scmp.ne.s32.totalorder %s145, 0
        %p1128 = scmp.ne.s32.totalorder %s145, 1
        %p1129 = pnand %p1127, %p1128
        %p1130 = pneg %p1129
        // Predicated region
        $region37: #{tpu_custom_call.1} parent=23 // pred_check
          _
        $region38: #{tpu_custom_call.1} parent=23 // pred_check_branch
          %1132 = sbr.rel (%p1129) target = $region40
        $region39: #{tpu_custom_call.1} parent=23 // pred_region
          %v1133 = vmul.f32 %v159, 0.6
          %v1134 = vmul.f32 %v160, 0.6
          %v1135 = vmul.f32 %v161, 0.6
          %v1136 = vmul.f32 %v162, 0.6
          %v1137 = vmul.f32 %v163, 0.6
          %v1138 = vmul.f32 %v164, 0.6
          %v1139 = vadd.f32 %v1133, 0.5
          %v1140 = vadd.f32 %v1134, 0.5
          %v1141 = vadd.f32 %v1135, 0.5
          %v1142 = vadd.f32 %v1136, 0.5
          %v1143 = vadd.f32 %v1137, 0.5
          %v1144 = vadd.f32 %v1138, 0.5
          %v1145 = vfloor.f32 %v1139
          %v1146 = vfloor.f32 %v1140
          %v1147 = vfloor.f32 %v1141
          %v1148 = vfloor.f32 %v1142
          %v1149 = vfloor.f32 %v1143
          %v1150 = vfloor.f32 %v1144
          %v1151 = vmax.f32 %v1145, 0.0
          %v1152 = vmax.f32 %v1146, 0.0
          %v1153 = vmax.f32 %v1147, 0.0
          %v1154 = vmax.f32 %v1148, 0.0
          %v1155 = vmax.f32 %v1149, 0.0
          %v1156 = vmax.f32 %v1150, 0.0
          %v1157 = vmin.f32 %v1151, 255.0
          %v1158 = vmin.f32 %v1152, 255.0
          %v1159 = vmin.f32 %v1153, 255.0
          %v1160 = vmin.f32 %v1154, 255.0
          %v1161 = vmin.f32 %v1155, 255.0
          %v1162 = vmin.f32 %v1156, 255.0
          %v1163 = vmul.f32 %v1157, 0.003921569
          %v1164 = vmul.f32 %v1158, 0.003921569
          %v1165 = vmul.f32 %v1159, 0.003921569
          %v1166 = vmul.f32 %v1160, 0.003921569
          %v1167 = vmul.f32 %v1161, 0.003921569
          %v1168 = vmul.f32 %v1162, 0.003921569
          %1169 = vst [vmem:[%s144] sm:$0xff] %v1163
          %1170 = vst [vmem:[%s144 + $0x8] sm:$0xff] %v1164
          %1171 = vst [vmem:[%s144 + $0x10] sm:$0xff] %v1165
          %1172 = vst [vmem:[%s144 + $0x18] sm:$0xff] %v1166
          %1173 = vst [vmem:[%s144 + $0x20] sm:$0xff] %v1167
          %1174 = vst [vmem:[%s144 + $0x28] sm:$0xff] %v1168
        $region40: #{tpu_custom_call.1} parent=23 // pred_fallthru
          _
        %s1175 = sand.u32 %s62, 1
        %s1176 = scalar_lea.sflag [#allocation7], %s1175
        %s1177 = sand.u32 %s62, 1
        %s1178 = smul.addr %s1177, 48
        %s1179 = scalar_lea.vmem [#allocation8], %s1178
        // Predicated region
        $region41: #{tpu_custom_call.1} parent=23 // pred_check
          %p1180 = pneg %p72
        $region42: #{tpu_custom_call.1} parent=23 // pred_check_branch
          %1182 = sbr.rel (%p1180) target = $region44
        $region43: #{tpu_custom_call.1} parent=23 // pred_region
          %s1184 = ssub.s32 768, 768
          %1185 = vsyncadd %s1176, %s1184
          %s1186 = smul.addr %s28, 6
          %s1187 = smul.addr %s1186, 128
          %s1188 = scalar_lea.hbm %s3, %s1187
          %s1189 = sshll.u32 %s1179, 4
          %s1190 = int_to_ptr.vmem [resolvable:$true] %s1189
          %1195 = dma.vmem_to_hbm [thread:$0]  %s1190, 768, %s1188, %s1176, 128, 128, 8
        $region44: #{tpu_custom_call.1} parent=23 // pred_fallthru
          _
      $region24: #{tpu_custom_call.1} parent=5 // pred_fallthru
        _
      %p1196 = scmp.le.s32.totalorder 2, %s23
      // Predicated region
      $region45: #{tpu_custom_call.1} parent=5 // pred_check
        %p1197 = pneg %p1196
      $region46: #{tpu_custom_call.1} parent=5 // pred_check_branch
        %1199 = sbr.rel (%p1197) target = $region48
      $region47: #{tpu_custom_call.1} parent=5 // pred_region
        %s1200 = ssub.s32 %s23, 2
        // Predicated region
        $region49: #{tpu_custom_call.1} parent=47 // pred_check
          %p1201 = pneg %p78
        $region50: #{tpu_custom_call.1} parent=47 // pred_check_branch
          %1203 = sbr.rel (%p1201) target = $region52
        $region51: #{tpu_custom_call.1} parent=47 // pred_region
          %s1204 = sand.u32 %s63, 1
          %s1205 = scalar_lea.sflag [#allocation7], %s1204
          %s1206 = sand.u32 %s63, 1
          %s1207 = smul.addr %s1206, 48
          %s1208 = scalar_lea.vmem [#allocation8], %s1207
          %1209 = dma.done %s1205, 768
        $region52: #{tpu_custom_call.1} parent=47 // pred_fallthru
          _
      $region48: #{tpu_custom_call.1} parent=5 // pred_fallthru
        _
    $region6: #{tpu_custom_call.1} parent=1 // loop_footer
      %s27 = sadd.s32 1, %s23
    $region7: #{tpu_custom_call.1} parent=1 // loop_footer_branch
      %22 = sbr.rel target = $region3
    $region8: #{tpu_custom_call.1} parent=1 // loop_exit
      _
    %1210 = vsyncpa [#allocation6], 1
    %s1211 = scalar_lea.sflag [#allocation6], 1
    %1212 = vsyncpa %s1211, 1
    %1213 = vsyncpa [#allocation7], 1
    %s1214 = scalar_lea.sflag [#allocation7], 1
    %1215 = vsyncpa %s1214, 1

</llo_original>
